<compile_context>
chip_gen: v7x
topology: tpu7x:2x2x1
jax: 0.10.0
libtpu: 0.0.40
codegen_flags: <defaults>
</compile_context>

<pallas_src>
import math
import jax
import jax.numpy as jnp
from jax import lax
from jax.experimental import pallas as pl
from jax.experimental.pallas import tpu as pltpu

# ---------------- config (small, consistent with the module) ----------------
BATCH = 2
SEQ = 8                    # sequence length of the example input
D_MODEL = 32
N_HEADS = 4
D_HEAD = D_MODEL // N_HEADS
D_FF = 4 * D_MODEL
N_BUCKETS = 8              # config.n_buckets
MAX_DISTANCE = 128         # PyTorch forward uses the bucket-fn default (128), not config.seq_len
IS_CAUSAL = True
LN_EPS = 1e-5
SCALE = D_HEAD ** (-0.5)
GELU_C = math.sqrt(2.0 / math.pi)
MASK_VALUE = -1e30         # finite causal mask value (exp underflows to 0; no inf-inf NaNs)

# Matmul-operand dtype (accumulation is always f32 via preferred_element_type).
# Set to jnp.bfloat16 on v6e/v7x at realistic sizes: the wrapper converts the weights so they are
# HBM-resident bf16 (half the weight DMA) and the MXU runs at native bf16 rate; LN/softmax/GELU
# elementwise math stays f32 (v5e has no bf16 VPU/EUP).  Kept f32 here so the toy-size check
# against the f32 reference stays tight (loosen tolerances if switching).
MXU_DTYPE = jnp.float32
# Softmax denominator: approx=True uses the EUP vrcp slot (nearly free); set False for
# training-grade accuracy.
APPROX_SOFTMAX_RECIP = True


# ---------------- small helpers (kernel-side) ----------------
def _layernorm(v, g, b):
    mu = jnp.mean(v, axis=-1, keepdims=True)
    var = jnp.mean((v - mu) ** 2, axis=-1, keepdims=True)
    return (v - mu) * jax.lax.rsqrt(var + LN_EPS) * g + b


def _mm(a, b):      # 2-D matmul, f32 accumulation on the MXU
    return jnp.dot(a.astype(MXU_DTYPE), b.astype(MXU_DTYPE),
                   preferred_element_type=jnp.float32)


def _split_heads(mat):
    # (L, H*DH) -> (H, L, DH); static lane slices (lane-tile aligned at real D_HEAD=128) stacked
    # on the untiled outer axis.
    return jnp.stack([mat[:, h * D_HEAD:(h + 1) * D_HEAD] for h in range(N_HEADS)], axis=0)


# ---------------- Pallas kernel (one batch element per grid step) ----------------
def transformer_block_kernel(emb_ref,                       # (N_BUCKETS, H) f32 in SMEM
                             x_ref,                          # (L, D) block of x
                             ln1_g_ref, ln1_b_ref,
                             wqkv_ref, bqkv_ref,             # (D, 3D), (1, 3D)
                             wo_ref, bo_ref,                 # (D, D),  (1, D)
                             ln2_g_ref, ln2_b_ref,
                             wfc_ref, bfc_ref,               # (D, 4D), (1, 4D)
                             wpr_ref, bpr_ref,               # (4D, D), (1, D)
                             o_ref):                         # (L, D)
    x = x_ref[...]                                           # (L, D)
    h1 = _layernorm(x, ln1_g_ref[...], ln1_b_ref[...])

    # ---- fused QKV: one lane-dense (L, D) x (D, 3D) MXU matmul ----
    qkv = _mm(h1, wqkv_ref[...]) + bqkv_ref[...]             # (L, 3D) f32
    q = qkv[:, 0:D_MODEL] * SCALE                            # fold scale into q once
    k = qkv[:, D_MODEL:2 * D_MODEL]
    v = qkv[:, 2 * D_MODEL:3 * D_MODEL]
    qh = _split_heads(q)                                     # (H, L, DH)
    kh = _split_heads(k)
    vh = _split_heads(v)

    # ---- relative-position bias + causal mask, computed in-kernel from iotas ----
    # (no (H, L, L) tensor ever touches HBM; the (N_BUCKETS, H) table is read from SMEM)
    qpos = lax.broadcasted_iota(jnp.int32, (SEQ, SEQ), 0)    # query index
    kpos = lax.broadcasted_iota(jnp.int32, (SEQ, SEQ), 1)    # key index
    n = jnp.maximum(qpos - kpos, 0)                          # causal branch of the bucket fn
    max_exact = N_BUCKETS // 2
    n_safe = jnp.maximum(n, 1).astype(jnp.float32)           # guard log(0); masked by where below
    val_large = max_exact + (
        jnp.log(n_safe / max_exact) / math.log(MAX_DISTANCE / max_exact)
        * (N_BUCKETS - max_exact)
    ).astype(jnp.int32)
    val_large = jnp.minimum(val_large, N_BUCKETS - 1)
    bucket = jnp.where(n < max_exact, n, val_large)          # (L, L) int32
    causal_ok = kpos <= qpos                                  # (L, L) bool (IS_CAUSAL path)

    bias_heads = []
    for h in range(N_HEADS):                                 # tiny static loops: H*NB selects
        bh = jnp.zeros((SEQ, SEQ), jnp.float32)
        for b in range(N_BUCKETS):
            bh = bh + jnp.where(bucket == b, emb_ref[b, h], 0.0)
        bias_heads.append(bh)
    bias = jnp.stack(bias_heads, axis=0)                     # (H, L, L)

    # ---- head-batched attention core ----
    s = jnp.einsum('hqd,hkd->hqk', qh.astype(MXU_DTYPE), kh.astype(MXU_DTYPE),
                   preferred_element_type=jnp.float32)       # (H, L, L)
    s = s + bias
    s = jnp.where(causal_ok[None, :, :], s, MASK_VALUE)
    s = s - jnp.max(s, axis=-1, keepdims=True)
    p = jnp.exp(s)
    denom = jnp.sum(p, axis=-1, keepdims=True)
    if APPROX_SOFTMAX_RECIP:
        p = p * pl.reciprocal(denom, approx=True)
    else:
        p = p / denom
    oh = jnp.einsum('hqk,hkd->hqd', p.astype(MXU_DTYPE), vh.astype(MXU_DTYPE),
                    preferred_element_type=jnp.float32)      # (H, L, DH)

    # ---- out-projection: heads contiguous on the lane axis, one (L, D) x (D, D) matmul ----
    o_flat = jnp.concatenate([oh[h] for h in range(N_HEADS)], axis=-1)   # (L, D)
    attn = _mm(o_flat, wo_ref[...]) + bo_ref[...]

    x1 = x + attn

    # ---- MLP branch: x1 + MLP(LN2(x1)) ----
    h2 = _layernorm(x1, ln2_g_ref[...], ln2_b_ref[...])
    f = _mm(h2, wfc_ref[...]) + bfc_ref[...]                 # (L, 4D) lane-dense (128 wide)
    f = 0.5 * f * (1.0 + jnp.tanh(GELU_C * (f + 0.044715 * f * f * f)))  # GELU(tanh approx)
    f = _mm(f, wpr_ref[...]) + bpr_ref[...]

    o_ref[...] = (x1 + f).astype(o_ref.dtype)


# ---------------- wrapper ----------------
def _full_spec(shape):
    nd = len(shape)
    return pl.BlockSpec(shape, lambda b, _nd=nd: (0,) * _nd)


def transformer_block(x, emb_weight, params):
    assert IS_CAUSAL, "kernel implements the causal bucket/mask path of the module"
    Bb, Ll, Dd = x.shape
    p = params

    # Layout / dtype plumbing in plain JAX (free): fuse the QKV projection and pre-convert the
    # matmul weights to MXU_DTYPE so they are HBM-resident in that dtype.
    wqkv = jnp.concatenate([p["wq"], p["wk"], p["wv"]], axis=1).astype(MXU_DTYPE)   # (D, 3D)
    bqkv = jnp.concatenate([p["bq"], p["bk"], p["bv"]], axis=1)                      # (1, 3D)
    wo = p["wo"].astype(MXU_DTYPE)
    wfc = p["wfc"].astype(MXU_DTYPE)
    wpr = p["wpr"].astype(MXU_DTYPE)

    out = pl.pallas_call(
        transformer_block_kernel,
        out_shape=jax.ShapeDtypeStruct((Bb, Ll, Dd), jnp.float32),
        grid=(Bb,),
        in_specs=[
            pl.BlockSpec(memory_space=pltpu.MemorySpace.SMEM),            # emb (NB, H) -> SMEM
            pl.BlockSpec((None, Ll, Dd), lambda b: (b, 0, 0)),            # x
            _full_spec((1, Dd)), _full_spec((1, Dd)),                     # ln1 g/b
            _full_spec((Dd, 3 * Dd)), _full_spec((1, 3 * Dd)),            # wqkv / bqkv
            _full_spec((Dd, Dd)), _full_spec((1, Dd)),                    # wo / bo
            _full_spec((1, Dd)), _full_spec((1, Dd)),                     # ln2 g/b
            _full_spec((Dd, D_FF)), _full_spec((1, D_FF)),                # wfc / bfc
            _full_spec((D_FF, Dd)), _full_spec((1, Dd)),                  # wpr / bpr
        ],
        out_specs=pl.BlockSpec((None, Ll, Dd), lambda b: (b, 0, 0)),
        compiler_params=pltpu.CompilerParams(
            # batch axis is independent -> megacore-shardable on v7x; no-op on v5e/v6e
            dimension_semantics=("parallel",),
            # explicit scoped-VMEM budget (safe on all generations; everything here is tiny)
            vmem_limit_bytes=32 * 1024 * 1024,
        ),
    )(emb_weight.astype(jnp.float32), x,
      p["ln1_g"], p["ln1_b"],
      wqkv, bqkv, wo, p["bo"],
      p["ln2_g"], p["ln2_b"],
      wfc, p["bfc"], wpr, p["bpr"])
    return out


# ---------------- host-side bias helper (used ONLY by the pure-JAX reference) ----------------
def _relative_position_bucket(relative_position, is_causal=True, num_buckets=32, max_distance=128):
    ret = jnp.zeros_like(relative_position)
    n = -relative_position
    if not is_causal:
        num_buckets //= 2
        ret = ret + (n < 0).astype(jnp.int32) * num_buckets
        n = jnp.abs(n)
    else:
        n = jnp.maximum(n, 0)
    max_exact = num_buckets // 2
    is_small = n < max_exact
    n_safe = jnp.maximum(n, 1).astype(jnp.float32)            # guard log(0); discarded by where
    val_if_large = max_exact + (
        jnp.log(n_safe / max_exact) / math.log(max_distance / max_exact) * (num_buckets - max_exact)
    ).astype(jnp.int32)
    val_if_large = jnp.minimum(val_if_large, num_buckets - 1)
    return ret + jnp.where(is_small, n, val_if_large)


def relative_position_bias(emb_weight, qlen, klen):
    ctx = jnp.arange(qlen, dtype=jnp.int32)[:, None]
    mem = jnp.arange(klen, dtype=jnp.int32)[None, :]
    rp_bucket = _relative_position_bucket(mem - ctx, is_causal=IS_CAUSAL,
                                          num_buckets=N_BUCKETS, max_distance=MAX_DISTANCE)
    values = emb_weight[rp_bucket]                  # (qlen, klen, H)
    values = jnp.transpose(values, (2, 0, 1))       # (H, qlen, klen)
    if IS_CAUSAL:
        causal = jnp.tril(jnp.ones((qlen, klen), dtype=bool))
        values = jnp.where(causal[None, :, :], values, -jnp.inf)
    return values.astype(jnp.float32)


# ---------------- deterministic param init ----------------
def init_params(key):
    ks = jax.random.split(key, 16)
    def w(k, fi, fo):  # stored as (in, out): y = x @ w + b  (PyTorch does x @ W.T + b)
        return jax.random.normal(k, (fi, fo), jnp.float32) * 0.02
    def bias(k, n):
        return jax.random.normal(k, (1, n), jnp.float32) * 0.02
    params = {
        "ln1_g": jnp.ones((1, D_MODEL), jnp.float32),
        "ln1_b": jnp.zeros((1, D_MODEL), jnp.float32),
        "wq": w(ks[0], D_MODEL, D_MODEL), "bq": bias(ks[1], D_MODEL),
        "wk": w(ks[2], D_MODEL, D_MODEL), "bk": bias(ks[3], D_MODEL),
        "wv": w(ks[4], D_MODEL, D_MODEL), "bv": bias(ks[5], D_MODEL),
        "wo": w(ks[6], D_MODEL, D_MODEL), "bo": bias(ks[7], D_MODEL),
        "ln2_g": jnp.ones((1, D_MODEL), jnp.float32),
        "ln2_b": jnp.zeros((1, D_MODEL), jnp.float32),
        "wfc": w(ks[8], D_MODEL, D_FF), "bfc": bias(ks[9], D_FF),
        "wpr": w(ks[10], D_FF, D_MODEL), "bpr": bias(ks[11], D_MODEL),
    }
    emb_weight = jax.random.normal(ks[12], (N_BUCKETS, N_HEADS), jnp.float32) * 0.02
    return params, emb_weight


# ---------------- pure-JAX reference for verification ----------------
def reference(x, emb_weight, p):
    def ln(v, g, b):
        mu = v.mean(-1, keepdims=True)
        var = ((v - mu) ** 2).mean(-1, keepdims=True)
        return (v - mu) / jnp.sqrt(var + LN_EPS) * g + b
    Bb, Ll, Dd = x.shape
    attn_bias = relative_position_bias(emb_weight, Ll, Ll)
    h1 = ln(x, p["ln1_g"], p["ln1_b"])
    q = (h1 @ p["wq"] + p["bq"]).reshape(Bb, Ll, N_HEADS, D_HEAD).transpose(0, 2, 1, 3)
    k = (h1 @ p["wk"] + p["bk"]).reshape(Bb, Ll, N_HEADS, D_HEAD).transpose(0, 2, 1, 3)
    v = (h1 @ p["wv"] + p["bv"]).reshape(Bb, Ll, N_HEADS, D_HEAD).transpose(0, 2, 1, 3)
    s = jnp.einsum("bhqd,bhkd->bhqk", q, k) * SCALE + attn_bias[None]
    a = jax.nn.softmax(s, axis=-1)
    o = jnp.einsum("bhqk,bhkd->bhqd", a, v).transpose(0, 2, 1, 3).reshape(Bb, Ll, Dd)
    x1 = x + (o @ p["wo"] + p["bo"])
    h2 = ln(x1, p["ln2_g"], p["ln2_b"])
    f = h2 @ p["wfc"] + p["bfc"]
    f = 0.5 * f * (1.0 + jnp.tanh(GELU_C * (f + 0.044715 * f ** 3)))
    return x1 + (f @ p["wpr"] + p["bpr"])


if __name__ == "__main__":
    key = jax.random.PRNGKey(0)
    kx, kp = jax.random.split(key)
    x = jax.random.normal(kx, (BATCH, SEQ, D_MODEL), jnp.float32)
    params, emb_weight = init_params(kp)

    out = transformer_block(x, emb_weight, params)
    out = jax.block_until_ready(out)

    ref = jax.block_until_ready(reference(x, emb_weight, params))
    assert out.shape == (BATCH, SEQ, D_MODEL)
    # tolerance allows for the approximate (EUP) softmax reciprocal
    assert jnp.allclose(out, ref, atol=1e-3, rtol=1e-3), \
        f"max abs diff {jnp.max(jnp.abs(out - ref))}"
    print("KERNEL_OK")
</pallas_src>

<mosaic_0001>
module attributes {stable_mosaic.version = 11 : i64} {
  func.func @transformer_block_kernel(%arg0: i32, %arg1: memref<8x4xf32, #tpu.memory_space<smem>>, %arg2: memref<1x8x32xf32, #tpu.memory_space<vmem>>, %arg3: memref<1x32xf32, #tpu.memory_space<vmem>>, %arg4: memref<1x32xf32, #tpu.memory_space<vmem>>, %arg5: memref<32x96xf32, #tpu.memory_space<vmem>>, %arg6: memref<1x96xf32, #tpu.memory_space<vmem>>, %arg7: memref<32x32xf32, #tpu.memory_space<vmem>>, %arg8: memref<1x32xf32, #tpu.memory_space<vmem>>, %arg9: memref<1x32xf32, #tpu.memory_space<vmem>>, %arg10: memref<1x32xf32, #tpu.memory_space<vmem>>, %arg11: memref<32x128xf32, #tpu.memory_space<vmem>>, %arg12: memref<1x128xf32, #tpu.memory_space<vmem>>, %arg13: memref<128x32xf32, #tpu.memory_space<vmem>>, %arg14: memref<1x32xf32, #tpu.memory_space<vmem>>, %arg15: memref<1x8x32xf32, #tpu.memory_space<vmem>>) attributes {dimension_semantics = [#tpu.dimension_semantics<parallel>], iteration_bounds = array<i64: 2>, scalar_prefetch = 0 : i64, scratch_operands = 0 : i64, tpu.core_type = #tpu.core_type<tc>, window_params = [{transform_indices = @transform_0, window_bounds = array<i64: 8, 4>}, {transform_indices = @transform_1, window_bounds = array<i64: 1, 8, 32>}, {pipeline_mode = #tpu.pipeline_mode<synchronous>, transform_indices = @transform_2, window_bounds = array<i64: 1, 32>}, {pipeline_mode = #tpu.pipeline_mode<synchronous>, transform_indices = @transform_3, window_bounds = array<i64: 1, 32>}, {pipeline_mode = #tpu.pipeline_mode<synchronous>, transform_indices = @transform_4, window_bounds = array<i64: 32, 96>}, {pipeline_mode = #tpu.pipeline_mode<synchronous>, transform_indices = @transform_5, window_bounds = array<i64: 1, 96>}, {pipeline_mode = #tpu.pipeline_mode<synchronous>, transform_indices = @transform_6, window_bounds = array<i64: 32, 32>}, {pipeline_mode = #tpu.pipeline_mode<synchronous>, transform_indices = @transform_7, window_bounds = array<i64: 1, 32>}, {pipeline_mode = #tpu.pipeline_mode<synchronous>, transform_indices = @transform_8, window_bounds = array<i64: 1, 32>}, {pipeline_mode = #tpu.pipeline_mode<synchronous>, transform_indices = @transform_9, window_bounds = array<i64: 1, 32>}, {pipeline_mode = #tpu.pipeline_mode<synchronous>, transform_indices = @transform_10, window_bounds = array<i64: 32, 128>}, {pipeline_mode = #tpu.pipeline_mode<synchronous>, transform_indices = @transform_11, window_bounds = array<i64: 1, 128>}, {pipeline_mode = #tpu.pipeline_mode<synchronous>, transform_indices = @transform_12, window_bounds = array<i64: 128, 32>}, {pipeline_mode = #tpu.pipeline_mode<synchronous>, transform_indices = @transform_13, window_bounds = array<i64: 1, 32>}, {transform_indices = @transform_14, window_bounds = array<i64: 1, 8, 32>}]} {
    %c0 = arith.constant 0 : index
    %c0_0 = arith.constant 0 : index
    %c0_1 = arith.constant 0 : index
    %0 = vector.load %arg2[%c0, %c0_0, %c0_1] : memref<1x8x32xf32, #tpu.memory_space<vmem>>, vector<1x8x32xf32>
    %1 = vector.shape_cast %0 : vector<1x8x32xf32> to vector<8x32xf32>
    %c0_2 = arith.constant 0 : index
    %c0_3 = arith.constant 0 : index
    %2 = vector.load %arg3[%c0_2, %c0_3] : memref<1x32xf32, #tpu.memory_space<vmem>>, vector<1x32xf32>
    %c0_4 = arith.constant 0 : index
    %c0_5 = arith.constant 0 : index
    %3 = vector.load %arg4[%c0_4, %c0_5] : memref<1x32xf32, #tpu.memory_space<vmem>>, vector<1x32xf32>
    %cst = arith.constant dense<0.000000e+00> : vector<8xf32>
    %4 = vector.multi_reduction <add>, %1, %cst [1] : vector<8x32xf32> to vector<8xf32>
    %5 = vector.shape_cast %4 : vector<8xf32> to vector<8x1xf32>
    %cst_6 = arith.constant 3.200000e+01 : f32
    %6 = vector.broadcast %cst_6 : f32 to vector<8x1xf32>
    %7 = arith.divf %5, %6 : vector<8x1xf32>
    %8 = vector.broadcast %7 : vector<8x1xf32> to vector<8x32xf32>
    %9 = arith.subf %1, %8 : vector<8x32xf32>
    %10 = arith.mulf %9, %9 : vector<8x32xf32>
    %cst_7 = arith.constant dense<0.000000e+00> : vector<8xf32>
    %11 = vector.multi_reduction <add>, %10, %cst_7 [1] : vector<8x32xf32> to vector<8xf32>
    %12 = vector.shape_cast %11 : vector<8xf32> to vector<8x1xf32>
    %cst_8 = arith.constant 3.200000e+01 : f32
    %13 = vector.broadcast %cst_8 : f32 to vector<8x1xf32>
    %14 = arith.divf %12, %13 : vector<8x1xf32>
    %15 = vector.broadcast %7 : vector<8x1xf32> to vector<8x32xf32>
    %16 = arith.subf %1, %15 : vector<8x32xf32>
    %cst_9 = arith.constant 9.99999974E-6 : f32
    %17 = vector.broadcast %cst_9 : f32 to vector<8x1xf32>
    %18 = arith.addf %14, %17 : vector<8x1xf32>
    %19 = math.rsqrt %18 : vector<8x1xf32>
    %20 = vector.broadcast %19 : vector<8x1xf32> to vector<8x32xf32>
    %21 = arith.mulf %16, %20 : vector<8x32xf32>
    %22 = vector.broadcast %2 : vector<1x32xf32> to vector<8x32xf32>
    %23 = arith.mulf %21, %22 : vector<8x32xf32>
    %24 = vector.broadcast %3 : vector<1x32xf32> to vector<8x32xf32>
    %25 = arith.addf %23, %24 : vector<8x32xf32>
    %c0_10 = arith.constant 0 : index
    %c0_11 = arith.constant 0 : index
    %26 = vector.load %arg5[%c0_10, %c0_11] : memref<32x96xf32, #tpu.memory_space<vmem>>, vector<32x96xf32>
    %cst_12 = arith.constant dense<0.000000e+00> : vector<8x96xf32>
    %27 = tpu.matmul %25, %26, %cst_12 {dimension_numbers = #tpu.dot_dimension_numbers<[1], [0], [0], [1], [0, 0, 1, 1], [], []>} : vector<8x32xf32>, vector<32x96xf32>, vector<8x96xf32> -> vector<8x96xf32>
    %c0_13 = arith.constant 0 : index
    %c0_14 = arith.constant 0 : index
    %28 = vector.load %arg6[%c0_13, %c0_14] : memref<1x96xf32, #tpu.memory_space<vmem>>, vector<1x96xf32>
    %29 = vector.broadcast %28 : vector<1x96xf32> to vector<8x96xf32>
    %30 = arith.addf %27, %29 : vector<8x96xf32>
    %31 = vector.extract_strided_slice %30 {offsets = [0, 0], sizes = [8, 32], strides = [1, 1]} : vector<8x96xf32> to vector<8x32xf32>
    %cst_15 = arith.constant 0.353553385 : f32
    %32 = vector.broadcast %cst_15 : f32 to vector<8x32xf32>
    %33 = arith.mulf %31, %32 : vector<8x32xf32>
    %34 = vector.extract_strided_slice %30 {offsets = [0, 32], sizes = [8, 32], strides = [1, 1]} : vector<8x96xf32> to vector<8x32xf32>
    %35 = vector.extract_strided_slice %30 {offsets = [0, 64], sizes = [8, 32], strides = [1, 1]} : vector<8x96xf32> to vector<8x32xf32>
    %36 = vector.extract_strided_slice %33 {offsets = [0, 0], sizes = [8, 8], strides = [1, 1]} : vector<8x32xf32> to vector<8x8xf32>
    %37 = vector.extract_strided_slice %33 {offsets = [0, 8], sizes = [8, 8], strides = [1, 1]} : vector<8x32xf32> to vector<8x8xf32>
    %38 = vector.extract_strided_slice %33 {offsets = [0, 16], sizes = [8, 8], strides = [1, 1]} : vector<8x32xf32> to vector<8x8xf32>
    %39 = vector.extract_strided_slice %33 {offsets = [0, 24], sizes = [8, 8], strides = [1, 1]} : vector<8x32xf32> to vector<8x8xf32>
    %40 = vector.shape_cast %36 : vector<8x8xf32> to vector<1x8x8xf32>
    %41 = vector.shape_cast %37 : vector<8x8xf32> to vector<1x8x8xf32>
    %42 = vector.shape_cast %38 : vector<8x8xf32> to vector<1x8x8xf32>
    %43 = vector.shape_cast %39 : vector<8x8xf32> to vector<1x8x8xf32>
    %44 = tpu.concatenate %40, %41, %42, %43 in 0 : vector<1x8x8xf32>, vector<1x8x8xf32>, vector<1x8x8xf32>, vector<1x8x8xf32> -> vector<4x8x8xf32>
    %45 = vector.extract_strided_slice %34 {offsets = [0, 0], sizes = [8, 8], strides = [1, 1]} : vector<8x32xf32> to vector<8x8xf32>
    %46 = vector.extract_strided_slice %34 {offsets = [0, 8], sizes = [8, 8], strides = [1, 1]} : vector<8x32xf32> to vector<8x8xf32>
    %47 = vector.extract_strided_slice %34 {offsets = [0, 16], sizes = [8, 8], strides = [1, 1]} : vector<8x32xf32> to vector<8x8xf32>
    %48 = vector.extract_strided_slice %34 {offsets = [0, 24], sizes = [8, 8], strides = [1, 1]} : vector<8x32xf32> to vector<8x8xf32>
    %49 = vector.shape_cast %45 : vector<8x8xf32> to vector<1x8x8xf32>
    %50 = vector.shape_cast %46 : vector<8x8xf32> to vector<1x8x8xf32>
    %51 = vector.shape_cast %47 : vector<8x8xf32> to vector<1x8x8xf32>
    %52 = vector.shape_cast %48 : vector<8x8xf32> to vector<1x8x8xf32>
    %53 = tpu.concatenate %49, %50, %51, %52 in 0 : vector<1x8x8xf32>, vector<1x8x8xf32>, vector<1x8x8xf32>, vector<1x8x8xf32> -> vector<4x8x8xf32>
    %54 = vector.extract_strided_slice %35 {offsets = [0, 0], sizes = [8, 8], strides = [1, 1]} : vector<8x32xf32> to vector<8x8xf32>
    %55 = vector.extract_strided_slice %35 {offsets = [0, 8], sizes = [8, 8], strides = [1, 1]} : vector<8x32xf32> to vector<8x8xf32>
    %56 = vector.extract_strided_slice %35 {offsets = [0, 16], sizes = [8, 8], strides = [1, 1]} : vector<8x32xf32> to vector<8x8xf32>
    %57 = vector.extract_strided_slice %35 {offsets = [0, 24], sizes = [8, 8], strides = [1, 1]} : vector<8x32xf32> to vector<8x8xf32>
    %58 = vector.shape_cast %54 : vector<8x8xf32> to vector<1x8x8xf32>
    %59 = vector.shape_cast %55 : vector<8x8xf32> to vector<1x8x8xf32>
    %60 = vector.shape_cast %56 : vector<8x8xf32> to vector<1x8x8xf32>
    %61 = vector.shape_cast %57 : vector<8x8xf32> to vector<1x8x8xf32>
    %62 = tpu.concatenate %58, %59, %60, %61 in 0 : vector<1x8x8xf32>, vector<1x8x8xf32>, vector<1x8x8xf32>, vector<1x8x8xf32> -> vector<4x8x8xf32>
    %63 = tpu.iota {dimensions = array<i32: 0>} : vector<8x8xi32>
    %64 = tpu.iota {dimensions = array<i32: 1>} : vector<8x8xi32>
    %65 = arith.subi %63, %64 : vector<8x8xi32>
    %c0_i32 = arith.constant 0 : i32
    %66 = vector.broadcast %c0_i32 : i32 to vector<8x8xi32>
    %67 = arith.maxsi %65, %66 : vector<8x8xi32>
    %c1_i32 = arith.constant 1 : i32
    %68 = vector.broadcast %c1_i32 : i32 to vector<8x8xi32>
    %69 = arith.maxsi %67, %68 : vector<8x8xi32>
    %70 = arith.sitofp %69 : vector<8x8xi32> to vector<8x8xf32>
    %cst_16 = arith.constant 4.000000e+00 : f32
    %71 = vector.broadcast %cst_16 : f32 to vector<8x8xf32>
    %72 = arith.divf %70, %71 : vector<8x8xf32>
    %73 = math.log %72 : vector<8x8xf32>
    %cst_17 = arith.constant 3.46573591 : f32
    %74 = vector.broadcast %cst_17 : f32 to vector<8x8xf32>
    %75 = arith.divf %73, %74 : vector<8x8xf32>
    %cst_18 = arith.constant 4.000000e+00 : f32
    %76 = vector.broadcast %cst_18 : f32 to vector<8x8xf32>
    %77 = arith.mulf %75, %76 : vector<8x8xf32>
    %78 = arith.fptosi %77 : vector<8x8xf32> to vector<8x8xi32>
    %c4_i32 = arith.constant 4 : i32
    %79 = vector.broadcast %c4_i32 : i32 to vector<8x8xi32>
    %80 = arith.addi %79, %78 : vector<8x8xi32>
    %c7_i32 = arith.constant 7 : i32
    %81 = vector.broadcast %c7_i32 : i32 to vector<8x8xi32>
    %82 = arith.minsi %80, %81 : vector<8x8xi32>
    %c4_i32_19 = arith.constant 4 : i32
    %83 = vector.broadcast %c4_i32_19 : i32 to vector<8x8xi32>
    %84 = arith.cmpi slt, %67, %83 : vector<8x8xi32>
    %85 = arith.select %84, %67, %82 : vector<8x8xi1>, vector<8x8xi32>
    %86 = arith.cmpi sle, %64, %63 : vector<8x8xi32>
    %cst_20 = arith.constant 0.000000e+00 : f32
    %87 = vector.broadcast %cst_20 : f32 to vector<8x8xf32>
    %c0_i32_21 = arith.constant 0 : i32
    %88 = vector.broadcast %c0_i32_21 : i32 to vector<8x8xi32>
    %89 = arith.cmpi eq, %85, %88 : vector<8x8xi32>
    %c0_22 = arith.constant 0 : index
    %c0_23 = arith.constant 0 : index
    %90 = memref.load %arg1[%c0_22, %c0_23] : memref<8x4xf32, #tpu.memory_space<smem>>
    %cst_24 = arith.constant 0.000000e+00 : f32
    %91 = vector.broadcast %90 : f32 to vector<8x8xf32>
    %92 = vector.broadcast %cst_24 : f32 to vector<8x8xf32>
    %93 = arith.select %89, %91, %92 : vector<8x8xi1>, vector<8x8xf32>
    %94 = arith.addf %87, %93 : vector<8x8xf32>
    %c1_i32_25 = arith.constant 1 : i32
    %95 = vector.broadcast %c1_i32_25 : i32 to vector<8x8xi32>
    %96 = arith.cmpi eq, %85, %95 : vector<8x8xi32>
    %c1 = arith.constant 1 : index
    %c0_26 = arith.constant 0 : index
    %97 = memref.load %arg1[%c1, %c0_26] : memref<8x4xf32, #tpu.memory_space<smem>>
    %cst_27 = arith.constant 0.000000e+00 : f32
    %98 = vector.broadcast %97 : f32 to vector<8x8xf32>
    %99 = vector.broadcast %cst_27 : f32 to vector<8x8xf32>
    %100 = arith.select %96, %98, %99 : vector<8x8xi1>, vector<8x8xf32>
    %101 = arith.addf %94, %100 : vector<8x8xf32>
    %c2_i32 = arith.constant 2 : i32
    %102 = vector.broadcast %c2_i32 : i32 to vector<8x8xi32>
    %103 = arith.cmpi eq, %85, %102 : vector<8x8xi32>
    %c2 = arith.constant 2 : index
    %c0_28 = arith.constant 0 : index
    %104 = memref.load %arg1[%c2, %c0_28] : memref<8x4xf32, #tpu.memory_space<smem>>
    %cst_29 = arith.constant 0.000000e+00 : f32
    %105 = vector.broadcast %104 : f32 to vector<8x8xf32>
    %106 = vector.broadcast %cst_29 : f32 to vector<8x8xf32>
    %107 = arith.select %103, %105, %106 : vector<8x8xi1>, vector<8x8xf32>
    %108 = arith.addf %101, %107 : vector<8x8xf32>
    %c3_i32 = arith.constant 3 : i32
    %109 = vector.broadcast %c3_i32 : i32 to vector<8x8xi32>
    %110 = arith.cmpi eq, %85, %109 : vector<8x8xi32>
    %c3 = arith.constant 3 : index
    %c0_30 = arith.constant 0 : index
    %111 = memref.load %arg1[%c3, %c0_30] : memref<8x4xf32, #tpu.memory_space<smem>>
    %cst_31 = arith.constant 0.000000e+00 : f32
    %112 = vector.broadcast %111 : f32 to vector<8x8xf32>
    %113 = vector.broadcast %cst_31 : f32 to vector<8x8xf32>
    %114 = arith.select %110, %112, %113 : vector<8x8xi1>, vector<8x8xf32>
    %115 = arith.addf %108, %114 : vector<8x8xf32>
    %c4_i32_32 = arith.constant 4 : i32
    %116 = vector.broadcast %c4_i32_32 : i32 to vector<8x8xi32>
    %117 = arith.cmpi eq, %85, %116 : vector<8x8xi32>
    %c4 = arith.constant 4 : index
    %c0_33 = arith.constant 0 : index
    %118 = memref.load %arg1[%c4, %c0_33] : memref<8x4xf32, #tpu.memory_space<smem>>
    %cst_34 = arith.constant 0.000000e+00 : f32
    %119 = vector.broadcast %118 : f32 to vector<8x8xf32>
    %120 = vector.broadcast %cst_34 : f32 to vector<8x8xf32>
    %121 = arith.select %117, %119, %120 : vector<8x8xi1>, vector<8x8xf32>
    %122 = arith.addf %115, %121 : vector<8x8xf32>
    %c5_i32 = arith.constant 5 : i32
    %123 = vector.broadcast %c5_i32 : i32 to vector<8x8xi32>
    %124 = arith.cmpi eq, %85, %123 : vector<8x8xi32>
    %c5 = arith.constant 5 : index
    %c0_35 = arith.constant 0 : index
    %125 = memref.load %arg1[%c5, %c0_35] : memref<8x4xf32, #tpu.memory_space<smem>>
    %cst_36 = arith.constant 0.000000e+00 : f32
    %126 = vector.broadcast %125 : f32 to vector<8x8xf32>
    %127 = vector.broadcast %cst_36 : f32 to vector<8x8xf32>
    %128 = arith.select %124, %126, %127 : vector<8x8xi1>, vector<8x8xf32>
    %129 = arith.addf %122, %128 : vector<8x8xf32>
    %c6_i32 = arith.constant 6 : i32
    %130 = vector.broadcast %c6_i32 : i32 to vector<8x8xi32>
    %131 = arith.cmpi eq, %85, %130 : vector<8x8xi32>
    %c6 = arith.constant 6 : index
    %c0_37 = arith.constant 0 : index
    %132 = memref.load %arg1[%c6, %c0_37] : memref<8x4xf32, #tpu.memory_space<smem>>
    %cst_38 = arith.constant 0.000000e+00 : f32
    %133 = vector.broadcast %132 : f32 to vector<8x8xf32>
    %134 = vector.broadcast %cst_38 : f32 to vector<8x8xf32>
    %135 = arith.select %131, %133, %134 : vector<8x8xi1>, vector<8x8xf32>
    %136 = arith.addf %129, %135 : vector<8x8xf32>
    %c7_i32_39 = arith.constant 7 : i32
    %137 = vector.broadcast %c7_i32_39 : i32 to vector<8x8xi32>
    %138 = arith.cmpi eq, %85, %137 : vector<8x8xi32>
    %c7 = arith.constant 7 : index
    %c0_40 = arith.constant 0 : index
    %139 = memref.load %arg1[%c7, %c0_40] : memref<8x4xf32, #tpu.memory_space<smem>>
    %cst_41 = arith.constant 0.000000e+00 : f32
    %140 = vector.broadcast %139 : f32 to vector<8x8xf32>
    %141 = vector.broadcast %cst_41 : f32 to vector<8x8xf32>
    %142 = arith.select %138, %140, %141 : vector<8x8xi1>, vector<8x8xf32>
    %143 = arith.addf %136, %142 : vector<8x8xf32>
    %cst_42 = arith.constant 0.000000e+00 : f32
    %144 = vector.broadcast %cst_42 : f32 to vector<8x8xf32>
    %c0_i32_43 = arith.constant 0 : i32
    %145 = vector.broadcast %c0_i32_43 : i32 to vector<8x8xi32>
    %146 = arith.cmpi eq, %85, %145 : vector<8x8xi32>
    %c0_44 = arith.constant 0 : index
    %c1_45 = arith.constant 1 : index
    %147 = memref.load %arg1[%c0_44, %c1_45] : memref<8x4xf32, #tpu.memory_space<smem>>
    %cst_46 = arith.constant 0.000000e+00 : f32
    %148 = vector.broadcast %147 : f32 to vector<8x8xf32>
    %149 = vector.broadcast %cst_46 : f32 to vector<8x8xf32>
    %150 = arith.select %146, %148, %149 : vector<8x8xi1>, vector<8x8xf32>
    %151 = arith.addf %144, %150 : vector<8x8xf32>
    %c1_i32_47 = arith.constant 1 : i32
    %152 = vector.broadcast %c1_i32_47 : i32 to vector<8x8xi32>
    %153 = arith.cmpi eq, %85, %152 : vector<8x8xi32>
    %c1_48 = arith.constant 1 : index
    %c1_49 = arith.constant 1 : index
    %154 = memref.load %arg1[%c1_48, %c1_49] : memref<8x4xf32, #tpu.memory_space<smem>>
    %cst_50 = arith.constant 0.000000e+00 : f32
    %155 = vector.broadcast %154 : f32 to vector<8x8xf32>
    %156 = vector.broadcast %cst_50 : f32 to vector<8x8xf32>
    %157 = arith.select %153, %155, %156 : vector<8x8xi1>, vector<8x8xf32>
    %158 = arith.addf %151, %157 : vector<8x8xf32>
    %c2_i32_51 = arith.constant 2 : i32
    %159 = vector.broadcast %c2_i32_51 : i32 to vector<8x8xi32>
    %160 = arith.cmpi eq, %85, %159 : vector<8x8xi32>
    %c2_52 = arith.constant 2 : index
    %c1_53 = arith.constant 1 : index
    %161 = memref.load %arg1[%c2_52, %c1_53] : memref<8x4xf32, #tpu.memory_space<smem>>
    %cst_54 = arith.constant 0.000000e+00 : f32
    %162 = vector.broadcast %161 : f32 to vector<8x8xf32>
    %163 = vector.broadcast %cst_54 : f32 to vector<8x8xf32>
    %164 = arith.select %160, %162, %163 : vector<8x8xi1>, vector<8x8xf32>
    %165 = arith.addf %158, %164 : vector<8x8xf32>
    %c3_i32_55 = arith.constant 3 : i32
    %166 = vector.broadcast %c3_i32_55 : i32 to vector<8x8xi32>
    %167 = arith.cmpi eq, %85, %166 : vector<8x8xi32>
    %c3_56 = arith.constant 3 : index
    %c1_57 = arith.constant 1 : index
    %168 = memref.load %arg1[%c3_56, %c1_57] : memref<8x4xf32, #tpu.memory_space<smem>>
    %cst_58 = arith.constant 0.000000e+00 : f32
    %169 = vector.broadcast %168 : f32 to vector<8x8xf32>
    %170 = vector.broadcast %cst_58 : f32 to vector<8x8xf32>
    %171 = arith.select %167, %169, %170 : vector<8x8xi1>, vector<8x8xf32>
    %172 = arith.addf %165, %171 : vector<8x8xf32>
    %c4_i32_59 = arith.constant 4 : i32
    %173 = vector.broadcast %c4_i32_59 : i32 to vector<8x8xi32>
    %174 = arith.cmpi eq, %85, %173 : vector<8x8xi32>
    %c4_60 = arith.constant 4 : index
    %c1_61 = arith.constant 1 : index
    %175 = memref.load %arg1[%c4_60, %c1_61] : memref<8x4xf32, #tpu.memory_space<smem>>
    %cst_62 = arith.constant 0.000000e+00 : f32
    %176 = vector.broadcast %175 : f32 to vector<8x8xf32>
    %177 = vector.broadcast %cst_62 : f32 to vector<8x8xf32>
    %178 = arith.select %174, %176, %177 : vector<8x8xi1>, vector<8x8xf32>
    %179 = arith.addf %172, %178 : vector<8x8xf32>
    %c5_i32_63 = arith.constant 5 : i32
    %180 = vector.broadcast %c5_i32_63 : i32 to vector<8x8xi32>
    %181 = arith.cmpi eq, %85, %180 : vector<8x8xi32>
    %c5_64 = arith.constant 5 : index
    %c1_65 = arith.constant 1 : index
    %182 = memref.load %arg1[%c5_64, %c1_65] : memref<8x4xf32, #tpu.memory_space<smem>>
    %cst_66 = arith.constant 0.000000e+00 : f32
    %183 = vector.broadcast %182 : f32 to vector<8x8xf32>
    %184 = vector.broadcast %cst_66 : f32 to vector<8x8xf32>
    %185 = arith.select %181, %183, %184 : vector<8x8xi1>, vector<8x8xf32>
    %186 = arith.addf %179, %185 : vector<8x8xf32>
    %c6_i32_67 = arith.constant 6 : i32
    %187 = vector.broadcast %c6_i32_67 : i32 to vector<8x8xi32>
    %188 = arith.cmpi eq, %85, %187 : vector<8x8xi32>
    %c6_68 = arith.constant 6 : index
    %c1_69 = arith.constant 1 : index
    %189 = memref.load %arg1[%c6_68, %c1_69] : memref<8x4xf32, #tpu.memory_space<smem>>
    %cst_70 = arith.constant 0.000000e+00 : f32
    %190 = vector.broadcast %189 : f32 to vector<8x8xf32>
    %191 = vector.broadcast %cst_70 : f32 to vector<8x8xf32>
    %192 = arith.select %188, %190, %191 : vector<8x8xi1>, vector<8x8xf32>
    %193 = arith.addf %186, %192 : vector<8x8xf32>
    %c7_i32_71 = arith.constant 7 : i32
    %194 = vector.broadcast %c7_i32_71 : i32 to vector<8x8xi32>
    %195 = arith.cmpi eq, %85, %194 : vector<8x8xi32>
    %c7_72 = arith.constant 7 : index
    %c1_73 = arith.constant 1 : index
    %196 = memref.load %arg1[%c7_72, %c1_73] : memref<8x4xf32, #tpu.memory_space<smem>>
    %cst_74 = arith.constant 0.000000e+00 : f32
    %197 = vector.broadcast %196 : f32 to vector<8x8xf32>
    %198 = vector.broadcast %cst_74 : f32 to vector<8x8xf32>
    %199 = arith.select %195, %197, %198 : vector<8x8xi1>, vector<8x8xf32>
    %200 = arith.addf %193, %199 : vector<8x8xf32>
    %cst_75 = arith.constant 0.000000e+00 : f32
    %201 = vector.broadcast %cst_75 : f32 to vector<8x8xf32>
    %c0_i32_76 = arith.constant 0 : i32
    %202 = vector.broadcast %c0_i32_76 : i32 to vector<8x8xi32>
    %203 = arith.cmpi eq, %85, %202 : vector<8x8xi32>
    %c0_77 = arith.constant 0 : index
    %c2_78 = arith.constant 2 : index
    %204 = memref.load %arg1[%c0_77, %c2_78] : memref<8x4xf32, #tpu.memory_space<smem>>
    %cst_79 = arith.constant 0.000000e+00 : f32
    %205 = vector.broadcast %204 : f32 to vector<8x8xf32>
    %206 = vector.broadcast %cst_79 : f32 to vector<8x8xf32>
    %207 = arith.select %203, %205, %206 : vector<8x8xi1>, vector<8x8xf32>
    %208 = arith.addf %201, %207 : vector<8x8xf32>
    %c1_i32_80 = arith.constant 1 : i32
    %209 = vector.broadcast %c1_i32_80 : i32 to vector<8x8xi32>
    %210 = arith.cmpi eq, %85, %209 : vector<8x8xi32>
    %c1_81 = arith.constant 1 : index
    %c2_82 = arith.constant 2 : index
    %211 = memref.load %arg1[%c1_81, %c2_82] : memref<8x4xf32, #tpu.memory_space<smem>>
    %cst_83 = arith.constant 0.000000e+00 : f32
    %212 = vector.broadcast %211 : f32 to vector<8x8xf32>
    %213 = vector.broadcast %cst_83 : f32 to vector<8x8xf32>
    %214 = arith.select %210, %212, %213 : vector<8x8xi1>, vector<8x8xf32>
    %215 = arith.addf %208, %214 : vector<8x8xf32>
    %c2_i32_84 = arith.constant 2 : i32
    %216 = vector.broadcast %c2_i32_84 : i32 to vector<8x8xi32>
    %217 = arith.cmpi eq, %85, %216 : vector<8x8xi32>
    %c2_85 = arith.constant 2 : index
    %c2_86 = arith.constant 2 : index
    %218 = memref.load %arg1[%c2_85, %c2_86] : memref<8x4xf32, #tpu.memory_space<smem>>
    %cst_87 = arith.constant 0.000000e+00 : f32
    %219 = vector.broadcast %218 : f32 to vector<8x8xf32>
    %220 = vector.broadcast %cst_87 : f32 to vector<8x8xf32>
    %221 = arith.select %217, %219, %220 : vector<8x8xi1>, vector<8x8xf32>
    %222 = arith.addf %215, %221 : vector<8x8xf32>
    %c3_i32_88 = arith.constant 3 : i32
    %223 = vector.broadcast %c3_i32_88 : i32 to vector<8x8xi32>
    %224 = arith.cmpi eq, %85, %223 : vector<8x8xi32>
    %c3_89 = arith.constant 3 : index
    %c2_90 = arith.constant 2 : index
    %225 = memref.load %arg1[%c3_89, %c2_90] : memref<8x4xf32, #tpu.memory_space<smem>>
    %cst_91 = arith.constant 0.000000e+00 : f32
    %226 = vector.broadcast %225 : f32 to vector<8x8xf32>
    %227 = vector.broadcast %cst_91 : f32 to vector<8x8xf32>
    %228 = arith.select %224, %226, %227 : vector<8x8xi1>, vector<8x8xf32>
    %229 = arith.addf %222, %228 : vector<8x8xf32>
    %c4_i32_92 = arith.constant 4 : i32
    %230 = vector.broadcast %c4_i32_92 : i32 to vector<8x8xi32>
    %231 = arith.cmpi eq, %85, %230 : vector<8x8xi32>
    %c4_93 = arith.constant 4 : index
    %c2_94 = arith.constant 2 : index
    %232 = memref.load %arg1[%c4_93, %c2_94] : memref<8x4xf32, #tpu.memory_space<smem>>
    %cst_95 = arith.constant 0.000000e+00 : f32
    %233 = vector.broadcast %232 : f32 to vector<8x8xf32>
    %234 = vector.broadcast %cst_95 : f32 to vector<8x8xf32>
    %235 = arith.select %231, %233, %234 : vector<8x8xi1>, vector<8x8xf32>
    %236 = arith.addf %229, %235 : vector<8x8xf32>
    %c5_i32_96 = arith.constant 5 : i32
    %237 = vector.broadcast %c5_i32_96 : i32 to vector<8x8xi32>
    %238 = arith.cmpi eq, %85, %237 : vector<8x8xi32>
    %c5_97 = arith.constant 5 : index
    %c2_98 = arith.constant 2 : index
    %239 = memref.load %arg1[%c5_97, %c2_98] : memref<8x4xf32, #tpu.memory_space<smem>>
    %cst_99 = arith.constant 0.000000e+00 : f32
    %240 = vector.broadcast %239 : f32 to vector<8x8xf32>
    %241 = vector.broadcast %cst_99 : f32 to vector<8x8xf32>
    %242 = arith.select %238, %240, %241 : vector<8x8xi1>, vector<8x8xf32>
    %243 = arith.addf %236, %242 : vector<8x8xf32>
    %c6_i32_100 = arith.constant 6 : i32
    %244 = vector.broadcast %c6_i32_100 : i32 to vector<8x8xi32>
    %245 = arith.cmpi eq, %85, %244 : vector<8x8xi32>
    %c6_101 = arith.constant 6 : index
    %c2_102 = arith.constant 2 : index
    %246 = memref.load %arg1[%c6_101, %c2_102] : memref<8x4xf32, #tpu.memory_space<smem>>
    %cst_103 = arith.constant 0.000000e+00 : f32
    %247 = vector.broadcast %246 : f32 to vector<8x8xf32>
    %248 = vector.broadcast %cst_103 : f32 to vector<8x8xf32>
    %249 = arith.select %245, %247, %248 : vector<8x8xi1>, vector<8x8xf32>
    %250 = arith.addf %243, %249 : vector<8x8xf32>
    %c7_i32_104 = arith.constant 7 : i32
    %251 = vector.broadcast %c7_i32_104 : i32 to vector<8x8xi32>
    %252 = arith.cmpi eq, %85, %251 : vector<8x8xi32>
    %c7_105 = arith.constant 7 : index
    %c2_106 = arith.constant 2 : index
    %253 = memref.load %arg1[%c7_105, %c2_106] : memref<8x4xf32, #tpu.memory_space<smem>>
    %cst_107 = arith.constant 0.000000e+00 : f32
    %254 = vector.broadcast %253 : f32 to vector<8x8xf32>
    %255 = vector.broadcast %cst_107 : f32 to vector<8x8xf32>
    %256 = arith.select %252, %254, %255 : vector<8x8xi1>, vector<8x8xf32>
    %257 = arith.addf %250, %256 : vector<8x8xf32>
    %cst_108 = arith.constant 0.000000e+00 : f32
    %258 = vector.broadcast %cst_108 : f32 to vector<8x8xf32>
    %c0_i32_109 = arith.constant 0 : i32
    %259 = vector.broadcast %c0_i32_109 : i32 to vector<8x8xi32>
    %260 = arith.cmpi eq, %85, %259 : vector<8x8xi32>
    %c0_110 = arith.constant 0 : index
    %c3_111 = arith.constant 3 : index
    %261 = memref.load %arg1[%c0_110, %c3_111] : memref<8x4xf32, #tpu.memory_space<smem>>
    %cst_112 = arith.constant 0.000000e+00 : f32
    %262 = vector.broadcast %261 : f32 to vector<8x8xf32>
    %263 = vector.broadcast %cst_112 : f32 to vector<8x8xf32>
    %264 = arith.select %260, %262, %263 : vector<8x8xi1>, vector<8x8xf32>
    %265 = arith.addf %258, %264 : vector<8x8xf32>
    %c1_i32_113 = arith.constant 1 : i32
    %266 = vector.broadcast %c1_i32_113 : i32 to vector<8x8xi32>
    %267 = arith.cmpi eq, %85, %266 : vector<8x8xi32>
    %c1_114 = arith.constant 1 : index
    %c3_115 = arith.constant 3 : index
    %268 = memref.load %arg1[%c1_114, %c3_115] : memref<8x4xf32, #tpu.memory_space<smem>>
    %cst_116 = arith.constant 0.000000e+00 : f32
    %269 = vector.broadcast %268 : f32 to vector<8x8xf32>
    %270 = vector.broadcast %cst_116 : f32 to vector<8x8xf32>
    %271 = arith.select %267, %269, %270 : vector<8x8xi1>, vector<8x8xf32>
    %272 = arith.addf %265, %271 : vector<8x8xf32>
    %c2_i32_117 = arith.constant 2 : i32
    %273 = vector.broadcast %c2_i32_117 : i32 to vector<8x8xi32>
    %274 = arith.cmpi eq, %85, %273 : vector<8x8xi32>
    %c2_118 = arith.constant 2 : index
    %c3_119 = arith.constant 3 : index
    %275 = memref.load %arg1[%c2_118, %c3_119] : memref<8x4xf32, #tpu.memory_space<smem>>
    %cst_120 = arith.constant 0.000000e+00 : f32
    %276 = vector.broadcast %275 : f32 to vector<8x8xf32>
    %277 = vector.broadcast %cst_120 : f32 to vector<8x8xf32>
    %278 = arith.select %274, %276, %277 : vector<8x8xi1>, vector<8x8xf32>
    %279 = arith.addf %272, %278 : vector<8x8xf32>
    %c3_i32_121 = arith.constant 3 : i32
    %280 = vector.broadcast %c3_i32_121 : i32 to vector<8x8xi32>
    %281 = arith.cmpi eq, %85, %280 : vector<8x8xi32>
    %c3_122 = arith.constant 3 : index
    %c3_123 = arith.constant 3 : index
    %282 = memref.load %arg1[%c3_122, %c3_123] : memref<8x4xf32, #tpu.memory_space<smem>>
    %cst_124 = arith.constant 0.000000e+00 : f32
    %283 = vector.broadcast %282 : f32 to vector<8x8xf32>
    %284 = vector.broadcast %cst_124 : f32 to vector<8x8xf32>
    %285 = arith.select %281, %283, %284 : vector<8x8xi1>, vector<8x8xf32>
    %286 = arith.addf %279, %285 : vector<8x8xf32>
    %c4_i32_125 = arith.constant 4 : i32
    %287 = vector.broadcast %c4_i32_125 : i32 to vector<8x8xi32>
    %288 = arith.cmpi eq, %85, %287 : vector<8x8xi32>
    %c4_126 = arith.constant 4 : index
    %c3_127 = arith.constant 3 : index
    %289 = memref.load %arg1[%c4_126, %c3_127] : memref<8x4xf32, #tpu.memory_space<smem>>
    %cst_128 = arith.constant 0.000000e+00 : f32
    %290 = vector.broadcast %289 : f32 to vector<8x8xf32>
    %291 = vector.broadcast %cst_128 : f32 to vector<8x8xf32>
    %292 = arith.select %288, %290, %291 : vector<8x8xi1>, vector<8x8xf32>
    %293 = arith.addf %286, %292 : vector<8x8xf32>
    %c5_i32_129 = arith.constant 5 : i32
    %294 = vector.broadcast %c5_i32_129 : i32 to vector<8x8xi32>
    %295 = arith.cmpi eq, %85, %294 : vector<8x8xi32>
    %c5_130 = arith.constant 5 : index
    %c3_131 = arith.constant 3 : index
    %296 = memref.load %arg1[%c5_130, %c3_131] : memref<8x4xf32, #tpu.memory_space<smem>>
    %cst_132 = arith.constant 0.000000e+00 : f32
    %297 = vector.broadcast %296 : f32 to vector<8x8xf32>
    %298 = vector.broadcast %cst_132 : f32 to vector<8x8xf32>
    %299 = arith.select %295, %297, %298 : vector<8x8xi1>, vector<8x8xf32>
    %300 = arith.addf %293, %299 : vector<8x8xf32>
    %c6_i32_133 = arith.constant 6 : i32
    %301 = vector.broadcast %c6_i32_133 : i32 to vector<8x8xi32>
    %302 = arith.cmpi eq, %85, %301 : vector<8x8xi32>
    %c6_134 = arith.constant 6 : index
    %c3_135 = arith.constant 3 : index
    %303 = memref.load %arg1[%c6_134, %c3_135] : memref<8x4xf32, #tpu.memory_space<smem>>
    %cst_136 = arith.constant 0.000000e+00 : f32
    %304 = vector.broadcast %303 : f32 to vector<8x8xf32>
    %305 = vector.broadcast %cst_136 : f32 to vector<8x8xf32>
    %306 = arith.select %302, %304, %305 : vector<8x8xi1>, vector<8x8xf32>
    %307 = arith.addf %300, %306 : vector<8x8xf32>
    %c7_i32_137 = arith.constant 7 : i32
    %308 = vector.broadcast %c7_i32_137 : i32 to vector<8x8xi32>
    %309 = arith.cmpi eq, %85, %308 : vector<8x8xi32>
    %c7_138 = arith.constant 7 : index
    %c3_139 = arith.constant 3 : index
    %310 = memref.load %arg1[%c7_138, %c3_139] : memref<8x4xf32, #tpu.memory_space<smem>>
    %cst_140 = arith.constant 0.000000e+00 : f32
    %311 = vector.broadcast %310 : f32 to vector<8x8xf32>
    %312 = vector.broadcast %cst_140 : f32 to vector<8x8xf32>
    %313 = arith.select %309, %311, %312 : vector<8x8xi1>, vector<8x8xf32>
    %314 = arith.addf %307, %313 : vector<8x8xf32>
    %315 = vector.shape_cast %143 : vector<8x8xf32> to vector<1x8x8xf32>
    %316 = vector.shape_cast %200 : vector<8x8xf32> to vector<1x8x8xf32>
    %317 = vector.shape_cast %257 : vector<8x8xf32> to vector<1x8x8xf32>
    %318 = vector.shape_cast %314 : vector<8x8xf32> to vector<1x8x8xf32>
    %319 = tpu.concatenate %315, %316, %317, %318 in 0 : vector<1x8x8xf32>, vector<1x8x8xf32>, vector<1x8x8xf32>, vector<1x8x8xf32> -> vector<4x8x8xf32>
    "tpu.trace_start"() <{level = 10 : i32, message = "hqd,hkd->hqk"}> : () -> ()
    %cst_141 = arith.constant dense<0.000000e+00> : vector<4x8x8xf32>
    %320 = tpu.matmul %44, %53, %cst_141 {dimension_numbers = #tpu.dot_dimension_numbers<[2], [2], [1], [1], [0, 0, 0, 1, 1, 1], [0], [0]>} : vector<4x8x8xf32>, vector<4x8x8xf32>, vector<4x8x8xf32> -> vector<4x8x8xf32>
    "tpu.trace_stop"() : () -> ()
    %321 = arith.addf %320, %319 : vector<4x8x8xf32>
    %322 = vector.shape_cast %86 : vector<8x8xi1> to vector<1x8x8xi1>
    %cst_142 = arith.constant -1.000000e+30 : f32
    %323 = vector.shape_cast %322 : vector<1x8x8xi1> to vector<1x8x8xi1>
    %324 = vector.broadcast %323 : vector<1x8x8xi1> to vector<4x8x8xi1>
    %325 = vector.broadcast %cst_142 : f32 to vector<4x8x8xf32>
    %326 = arith.select %324, %321, %325 : vector<4x8x8xi1>, vector<4x8x8xf32>
    %cst_143 = arith.constant dense<0xFF800000> : vector<4x8xf32>
    %327 = vector.multi_reduction <maximumf>, %326, %cst_143 [2] : vector<4x8x8xf32> to vector<4x8xf32>
    %328 = vector.shape_cast %327 : vector<4x8xf32> to vector<4x8x1xf32>
    %329 = vector.broadcast %328 : vector<4x8x1xf32> to vector<4x8x8xf32>
    %330 = arith.subf %326, %329 : vector<4x8x8xf32>
    %331 = math.exp %330 : vector<4x8x8xf32>
    %cst_144 = arith.constant dense<0.000000e+00> : vector<4x8xf32>
    %332 = vector.multi_reduction <add>, %331, %cst_144 [2] : vector<4x8x8xf32> to vector<4x8xf32>
    %333 = vector.shape_cast %332 : vector<4x8xf32> to vector<4x8x1xf32>
    %334 = tpu.reciprocal %333 {approx = true} : vector<4x8x1xf32> -> vector<4x8x1xf32>
    %335 = vector.broadcast %334 : vector<4x8x1xf32> to vector<4x8x8xf32>
    %336 = arith.mulf %331, %335 : vector<4x8x8xf32>
    "tpu.trace_start"() <{level = 10 : i32, message = "hqk,hkd->hqd"}> : () -> ()
    %cst_145 = arith.constant dense<0.000000e+00> : vector<4x8x8xf32>
    %337 = tpu.matmul %336, %62, %cst_145 {dimension_numbers = #tpu.dot_dimension_numbers<[2], [1], [1], [2], [0, 0, 0, 1, 1, 2], [0], [0]>} : vector<4x8x8xf32>, vector<4x8x8xf32>, vector<4x8x8xf32> -> vector<4x8x8xf32>
    "tpu.trace_stop"() : () -> ()
    %338 = vector.extract_strided_slice %337 {offsets = [0, 0, 0], sizes = [1, 8, 8], strides = [1, 1, 1]} : vector<4x8x8xf32> to vector<1x8x8xf32>
    %339 = vector.shape_cast %338 : vector<1x8x8xf32> to vector<8x8xf32>
    %340 = vector.extract_strided_slice %337 {offsets = [1, 0, 0], sizes = [1, 8, 8], strides = [1, 1, 1]} : vector<4x8x8xf32> to vector<1x8x8xf32>
    %341 = vector.shape_cast %340 : vector<1x8x8xf32> to vector<8x8xf32>
    %342 = vector.extract_strided_slice %337 {offsets = [2, 0, 0], sizes = [1, 8, 8], strides = [1, 1, 1]} : vector<4x8x8xf32> to vector<1x8x8xf32>
    %343 = vector.shape_cast %342 : vector<1x8x8xf32> to vector<8x8xf32>
    %344 = vector.extract_strided_slice %337 {offsets = [3, 0, 0], sizes = [1, 8, 8], strides = [1, 1, 1]} : vector<4x8x8xf32> to vector<1x8x8xf32>
    %345 = vector.shape_cast %344 : vector<1x8x8xf32> to vector<8x8xf32>
    %346 = tpu.concatenate %339, %341, %343, %345 in 1 : vector<8x8xf32>, vector<8x8xf32>, vector<8x8xf32>, vector<8x8xf32> -> vector<8x32xf32>
    %c0_146 = arith.constant 0 : index
    %c0_147 = arith.constant 0 : index
    %347 = vector.load %arg7[%c0_146, %c0_147] : memref<32x32xf32, #tpu.memory_space<vmem>>, vector<32x32xf32>
    %cst_148 = arith.constant dense<0.000000e+00> : vector<8x32xf32>
    %348 = tpu.matmul %346, %347, %cst_148 {dimension_numbers = #tpu.dot_dimension_numbers<[1], [0], [0], [1], [0, 0, 1, 1], [], []>} : vector<8x32xf32>, vector<32x32xf32>, vector<8x32xf32> -> vector<8x32xf32>
    %c0_149 = arith.constant 0 : index
    %c0_150 = arith.constant 0 : index
    %349 = vector.load %arg8[%c0_149, %c0_150] : memref<1x32xf32, #tpu.memory_space<vmem>>, vector<1x32xf32>
    %350 = vector.broadcast %349 : vector<1x32xf32> to vector<8x32xf32>
    %351 = arith.addf %348, %350 : vector<8x32xf32>
    %352 = arith.addf %1, %351 : vector<8x32xf32>
    %c0_151 = arith.constant 0 : index
    %c0_152 = arith.constant 0 : index
    %353 = vector.load %arg9[%c0_151, %c0_152] : memref<1x32xf32, #tpu.memory_space<vmem>>, vector<1x32xf32>
    %c0_153 = arith.constant 0 : index
    %c0_154 = arith.constant 0 : index
    %354 = vector.load %arg10[%c0_153, %c0_154] : memref<1x32xf32, #tpu.memory_space<vmem>>, vector<1x32xf32>
    %cst_155 = arith.constant dense<0.000000e+00> : vector<8xf32>
    %355 = vector.multi_reduction <add>, %352, %cst_155 [1] : vector<8x32xf32> to vector<8xf32>
    %356 = vector.shape_cast %355 : vector<8xf32> to vector<8x1xf32>
    %cst_156 = arith.constant 3.200000e+01 : f32
    %357 = vector.broadcast %cst_156 : f32 to vector<8x1xf32>
    %358 = arith.divf %356, %357 : vector<8x1xf32>
    %359 = vector.broadcast %358 : vector<8x1xf32> to vector<8x32xf32>
    %360 = arith.subf %352, %359 : vector<8x32xf32>
    %361 = arith.mulf %360, %360 : vector<8x32xf32>
    %cst_157 = arith.constant dense<0.000000e+00> : vector<8xf32>
    %362 = vector.multi_reduction <add>, %361, %cst_157 [1] : vector<8x32xf32> to vector<8xf32>
    %363 = vector.shape_cast %362 : vector<8xf32> to vector<8x1xf32>
    %cst_158 = arith.constant 3.200000e+01 : f32
    %364 = vector.broadcast %cst_158 : f32 to vector<8x1xf32>
    %365 = arith.divf %363, %364 : vector<8x1xf32>
    %366 = vector.broadcast %358 : vector<8x1xf32> to vector<8x32xf32>
    %367 = arith.subf %352, %366 : vector<8x32xf32>
    %cst_159 = arith.constant 9.99999974E-6 : f32
    %368 = vector.broadcast %cst_159 : f32 to vector<8x1xf32>
    %369 = arith.addf %365, %368 : vector<8x1xf32>
    %370 = math.rsqrt %369 : vector<8x1xf32>
    %371 = vector.broadcast %370 : vector<8x1xf32> to vector<8x32xf32>
    %372 = arith.mulf %367, %371 : vector<8x32xf32>
    %373 = vector.broadcast %353 : vector<1x32xf32> to vector<8x32xf32>
    %374 = arith.mulf %372, %373 : vector<8x32xf32>
    %375 = vector.broadcast %354 : vector<1x32xf32> to vector<8x32xf32>
    %376 = arith.addf %374, %375 : vector<8x32xf32>
    %c0_160 = arith.constant 0 : index
    %c0_161 = arith.constant 0 : index
    %377 = vector.load %arg11[%c0_160, %c0_161] : memref<32x128xf32, #tpu.memory_space<vmem>>, vector<32x128xf32>
    %cst_162 = arith.constant dense<0.000000e+00> : vector<8x128xf32>
    %378 = tpu.matmul %376, %377, %cst_162 {dimension_numbers = #tpu.dot_dimension_numbers<[1], [0], [0], [1], [0, 0, 1, 1], [], []>} : vector<8x32xf32>, vector<32x128xf32>, vector<8x128xf32> -> vector<8x128xf32>
    %c0_163 = arith.constant 0 : index
    %c0_164 = arith.constant 0 : index
    %379 = vector.load %arg12[%c0_163, %c0_164] : memref<1x128xf32, #tpu.memory_space<vmem>>, vector<1x128xf32>
    %380 = vector.broadcast %379 : vector<1x128xf32> to vector<8x128xf32>
    %381 = arith.addf %378, %380 : vector<8x128xf32>
    %cst_165 = arith.constant 5.000000e-01 : f32
    %382 = vector.broadcast %cst_165 : f32 to vector<8x128xf32>
    %383 = arith.mulf %382, %381 : vector<8x128xf32>
    %cst_166 = arith.constant 4.471500e-02 : f32
    %384 = vector.broadcast %cst_166 : f32 to vector<8x128xf32>
    %385 = arith.mulf %384, %381 : vector<8x128xf32>
    %386 = arith.mulf %385, %381 : vector<8x128xf32>
    %387 = arith.mulf %386, %381 : vector<8x128xf32>
    %388 = arith.addf %381, %387 : vector<8x128xf32>
    %cst_167 = arith.constant 0.797884583 : f32
    %389 = vector.broadcast %cst_167 : f32 to vector<8x128xf32>
    %390 = arith.mulf %389, %388 : vector<8x128xf32>
    %391 = math.tanh %390 : vector<8x128xf32>
    %cst_168 = arith.constant 1.000000e+00 : f32
    %392 = vector.broadcast %cst_168 : f32 to vector<8x128xf32>
    %393 = arith.addf %392, %391 : vector<8x128xf32>
    %394 = arith.mulf %383, %393 : vector<8x128xf32>
    %c0_169 = arith.constant 0 : index
    %c0_170 = arith.constant 0 : index
    %395 = vector.load %arg13[%c0_169, %c0_170] : memref<128x32xf32, #tpu.memory_space<vmem>>, vector<128x32xf32>
    %cst_171 = arith.constant dense<0.000000e+00> : vector<8x32xf32>
    %396 = tpu.matmul %394, %395, %cst_171 {dimension_numbers = #tpu.dot_dimension_numbers<[1], [0], [0], [1], [0, 0, 1, 1], [], []>} : vector<8x128xf32>, vector<128x32xf32>, vector<8x32xf32> -> vector<8x32xf32>
    %c0_172 = arith.constant 0 : index
    %c0_173 = arith.constant 0 : index
    %397 = vector.load %arg14[%c0_172, %c0_173] : memref<1x32xf32, #tpu.memory_space<vmem>>, vector<1x32xf32>
    %398 = vector.broadcast %397 : vector<1x32xf32> to vector<8x32xf32>
    %399 = arith.addf %396, %398 : vector<8x32xf32>
    %400 = arith.addf %352, %399 : vector<8x32xf32>
    %c0_174 = arith.constant 0 : index
    %c0_175 = arith.constant 0 : index
    %c0_176 = arith.constant 0 : index
    %401 = vector.load %arg15[%c0_174, %c0_175, %c0_176] : memref<1x8x32xf32, #tpu.memory_space<vmem>>, vector<1x8x32xf32>
    %402 = vector.shape_cast %401 : vector<1x8x32xf32> to vector<8x32xf32>
    %403 = vector.shape_cast %400 : vector<8x32xf32> to vector<1x8x32xf32>
    tpu.vector_store %arg15[%c0_174, %c0_175, %c0_176], %403 {strides = array<i32>} : memref<1x8x32xf32, #tpu.memory_space<vmem>>, vector<1x8x32xf32>,
    return
  }
  func.func @transform_0(%arg0: i32) -> (i32, i32) {
    %c0_i32 = arith.constant 0 : i32
    %c0_i32_0 = arith.constant 0 : i32
    %c0_i32_1 = arith.constant 0 : i32
    return %c0_i32, %c0_i32_0 : i32, i32
  }
  func.func @transform_1(%arg0: i32) -> (i32, i32, i32) {
    %c0_i32 = arith.constant 0 : i32
    %c0_i32_0 = arith.constant 0 : i32
    %c0_i32_1 = arith.constant 0 : i32
    return %arg0, %c0_i32, %c0_i32_0 : i32, i32, i32
  }
  func.func @transform_2(%arg0: i32) -> (i32, i32) {
    %c0_i32 = arith.constant 0 : i32
    %c0_i32_0 = arith.constant 0 : i32
    %c0_i32_1 = arith.constant 0 : i32
    return %c0_i32, %c0_i32_0 : i32, i32
  }
  func.func @transform_3(%arg0: i32) -> (i32, i32) {
    %c0_i32 = arith.constant 0 : i32
    %c0_i32_0 = arith.constant 0 : i32
    %c0_i32_1 = arith.constant 0 : i32
    return %c0_i32, %c0_i32_0 : i32, i32
  }
  func.func @transform_4(%arg0: i32) -> (i32, i32) {
    %c0_i32 = arith.constant 0 : i32
    %c0_i32_0 = arith.constant 0 : i32
    %c0_i32_1 = arith.constant 0 : i32
    return %c0_i32, %c0_i32_0 : i32, i32
  }
  func.func @transform_5(%arg0: i32) -> (i32, i32) {
    %c0_i32 = arith.constant 0 : i32
    %c0_i32_0 = arith.constant 0 : i32
    %c0_i32_1 = arith.constant 0 : i32
    return %c0_i32, %c0_i32_0 : i32, i32
  }
  func.func @transform_6(%arg0: i32) -> (i32, i32) {
    %c0_i32 = arith.constant 0 : i32
    %c0_i32_0 = arith.constant 0 : i32
    %c0_i32_1 = arith.constant 0 : i32
    return %c0_i32, %c0_i32_0 : i32, i32
  }
  func.func @transform_7(%arg0: i32) -> (i32, i32) {
    %c0_i32 = arith.constant 0 : i32
    %c0_i32_0 = arith.constant 0 : i32
    %c0_i32_1 = arith.constant 0 : i32
    return %c0_i32, %c0_i32_0 : i32, i32
  }
  func.func @transform_8(%arg0: i32) -> (i32, i32) {
    %c0_i32 = arith.constant 0 : i32
    %c0_i32_0 = arith.constant 0 : i32
    %c0_i32_1 = arith.constant 0 : i32
    return %c0_i32, %c0_i32_0 : i32, i32
  }
  func.func @transform_9(%arg0: i32) -> (i32, i32) {
    %c0_i32 = arith.constant 0 : i32
    %c0_i32_0 = arith.constant 0 : i32
    %c0_i32_1 = arith.constant 0 : i32
    return %c0_i32, %c0_i32_0 : i32, i32
  }
  func.func @transform_10(%arg0: i32) -> (i32, i32) {
    %c0_i32 = arith.constant 0 : i32
    %c0_i32_0 = arith.constant 0 : i32
    %c0_i32_1 = arith.constant 0 : i32
    return %c0_i32, %c0_i32_0 : i32, i32
  }
  func.func @transform_11(%arg0: i32) -> (i32, i32) {
    %c0_i32 = arith.constant 0 : i32
    %c0_i32_0 = arith.constant 0 : i32
    %c0_i32_1 = arith.constant 0 : i32
    return %c0_i32, %c0_i32_0 : i32, i32
  }
  func.func @transform_12(%arg0: i32) -> (i32, i32) {
    %c0_i32 = arith.constant 0 : i32
    %c0_i32_0 = arith.constant 0 : i32
    %c0_i32_1 = arith.constant 0 : i32
    return %c0_i32, %c0_i32_0 : i32, i32
  }
  func.func @transform_13(%arg0: i32) -> (i32, i32) {
    %c0_i32 = arith.constant 0 : i32
    %c0_i32_0 = arith.constant 0 : i32
    %c0_i32_1 = arith.constant 0 : i32
    return %c0_i32, %c0_i32_0 : i32, i32
  }
  func.func @transform_14(%arg0: i32) -> (i32, i32, i32) {
    %c0_i32 = arith.constant 0 : i32
    %c0_i32_0 = arith.constant 0 : i32
    %c0_i32_1 = arith.constant 0 : i32
    return %arg0, %c0_i32, %c0_i32_0 : i32, i32, i32
  }
}

</mosaic_0001>

<llo_original>
// kernel: tpu_custom_call.1
$region0: #{tpu_custom_call.1}
  #allocation0 [shape = 'u32[]', space=smem, size = 0x4, offset = 0x4, fixed_abs, tag = 'smem constant byte address 0x4 - core index']
  #allocation1 [shape = 'u32[144,128]{1,0:T(1,128)}', space=vmem, size = 0x12000, scoped, tag = 'internal scratch']
  %s0 = inlined_call_operand.vmem [shape: f32[8,4], index: 0, kind: input, shape index: {}]
  %s1 = inlined_call_operand.vmem [shape: f32[2,8,32], index: 1, kind: input, shape index: {}]
  %s2 = inlined_call_operand.vmem [shape: f32[1,32], index: 2, kind: input, shape index: {}]
  %s3 = inlined_call_operand.vmem [shape: f32[1,32], index: 3, kind: input, shape index: {}]
  %s4 = inlined_call_operand.vmem [shape: f32[32,96], index: 4, kind: input, shape index: {}]
  %s5 = inlined_call_operand.vmem [shape: f32[1,96], index: 5, kind: input, shape index: {}]
  %s6 = inlined_call_operand.vmem [shape: f32[32,32], index: 6, kind: input, shape index: {}]
  %s7 = inlined_call_operand.vmem [shape: f32[1,32], index: 7, kind: input, shape index: {}]
  %s8 = inlined_call_operand.vmem [shape: f32[1,32], index: 8, kind: input, shape index: {}]
  %s9 = inlined_call_operand.vmem [shape: f32[1,32], index: 9, kind: input, shape index: {}]
  %s10 = inlined_call_operand.vmem [shape: f32[32,128], index: 10, kind: input, shape index: {}]
  %s11 = inlined_call_operand.vmem [shape: f32[1,128], index: 11, kind: input, shape index: {}]
  %s12 = inlined_call_operand.vmem [shape: f32[128,32], index: 12, kind: input, shape index: {}]
  %s13 = inlined_call_operand.vmem [shape: f32[1,32], index: 13, kind: input, shape index: {}]
  %s14 = inlined_call_operand.hbm [shape: f32[2,8,32], index: 14, kind: output, shape index: {}]
  %s15 = sld [smem:[#allocation0]]
  $region93: #{tpu_custom_call.1} parent=0
    _
  %s17 = ssub.s32 1, %s15
  %s18 = scalar_select 0, %s17, %s15
  $region1: #{tpu_custom_call.1} parent=0
    #allocation2 [shape = 'u8[4096]{0}', space=smem, size = 0x1000, scoped, tag = 'input window, operand 0, single buffered']
    #allocation3 [shape = 's32[2]{0}', space=sflag, size = 0x8, scoped, tag = 'scoped memory for tpu_custom_call.1']
    #allocation4 [shape = 's32[2]{0}', space=sflag, size = 0x8, scoped, tag = 'scoped memory for tpu_custom_call.1']
    #allocation5 [shape = 'u8[8192]{0}', space=vmem, size = 0x2000, scoped, tag = 'output window, operand 0']
    %19 = vsyncpa [#allocation4], 0
    %20 = vsyncpa [#allocation3], 0
    %s21 = scalar_lea.sflag [#allocation3], 1
    %22 = vsyncpa %s21, 0
    loop: start=0, step=1, limit=4
    $region2: #{tpu_custom_call.1} parent=1 // loop_pre_header
      _
    $region3: #{tpu_custom_call.1} parent=1 // loop_header
      %s24 = sphi 0, %s28
      %p25 = scmp.ge.s32.totalorder %s24, 4
      %s32 = sphi 0, %s32
      %s34 = sphi 0, %s32
      %s35 = sphi 0, %s34
      %s49 = sphi 0, %s35
      %s55 = sphi 0, %s57
      %s58 = sphi 0, %s55
      %s59 = sphi 0, %s58
      %s75 = sphi 0, %s59
      %s79 = sphi 0, %s79
      %s81 = sphi 0, %s79
      %s82 = sphi 0, %s81
      %s96 = sphi 0, %s82
      %s100 = sphi 0, %s100
      %s102 = sphi 0, %s100
      %s103 = sphi 0, %s102
      %s117 = sphi 0, %s103
      %s121 = sphi 0, %s121
      %s123 = sphi 0, %s121
      %s124 = sphi 0, %s123
      %s138 = sphi 0, %s124
      %s142 = sphi 0, %s142
      %s144 = sphi 0, %s142
      %s145 = sphi 0, %s144
      %s159 = sphi 0, %s145
      %s163 = sphi 0, %s163
      %s165 = sphi 0, %s163
      %s166 = sphi 0, %s165
      %s180 = sphi 0, %s166
      %s184 = sphi 0, %s184
      %s186 = sphi 0, %s184
      %s187 = sphi 0, %s186
      %s201 = sphi 0, %s187
      %s205 = sphi 0, %s205
      %s207 = sphi 0, %s205
      %s208 = sphi 0, %s207
      %s222 = sphi 0, %s208
      %s226 = sphi 0, %s226
      %s228 = sphi 0, %s226
      %s229 = sphi 0, %s228
      %s243 = sphi 0, %s229
      %s247 = sphi 0, %s247
      %s249 = sphi 0, %s247
      %s250 = sphi 0, %s249
      %s264 = sphi 0, %s250
      %s268 = sphi 0, %s268
      %s270 = sphi 0, %s268
      %s271 = sphi 0, %s270
      %s285 = sphi 0, %s271
      %s289 = sphi 0, %s289
      %s291 = sphi 0, %s289
      %s292 = sphi 0, %s291
      %s306 = sphi 0, %s292
      %s310 = sphi 0, %s310
      %s312 = sphi 0, %s310
      %s313 = sphi 0, %s312
      %s327 = sphi 0, %s313
      %s333 = sphi 0, %s335
      %s336 = sphi 0, %s333
      %s337 = sphi 0, %s336
      %s353 = sphi 0, %s337
    $region4: #{tpu_custom_call.1} parent=1 // loop_header_branch
      %27 = sbr.rel (%p25) target = $region8
    $region5: #{tpu_custom_call.1} parent=1 // loop_body
      %s29 = ssub.s32 %s24, 1
      %s30 = ssub.s32 %s24, 2
      %s31 = sadd.s32 %s24, 1
      %s33 = sadd.s32 %s32, 1
      %p36 = scmp.eq.s32.totalorder %s24, 1
      %p37 = scmp.ne.s32.totalorder %s32, %s34
      %p38 = scmp.eq.s32.totalorder %s24, 0
      %p39 = por %p37, %p38
      %p40 = scmp.ne.s32.totalorder %s32, %s34
      %p41 = scmp.eq.s32.totalorder %s29, 1
      %p42 = por %p40, %p41
      %p43 = scmp.ne.s32.totalorder %s34, %s35
      %p44 = scmp.eq.s32.totalorder %s29, 0
      %p45 = por %p43, %p44
      %p46 = scmp.ne.s32.totalorder %s34, %s35
      %p47 = scmp.eq.s32.totalorder %s30, 1
      %p48 = por %p46, %p47
      %p50 = scmp.ne.s32.totalorder %s35, %s49
      %p51 = scmp.eq.s32.totalorder %s30, 0
      %p52 = por %p50, %p51
      %s53 = ssub.s32 %s24, %s31
      %p54 = scmp.eq.s32.totalorder %s53, 0
      %s56 = sadd.s32 %s55, 1
      %s57 = scalar_select %p54, %s55, %s56
      %p60 = pneg %p54
      %p61 = scmp.eq.s32.totalorder %s24, 1
      %p62 = por %p60, %p61
      %p63 = scmp.ne.s32.totalorder %s55, %s58
      %p64 = scmp.eq.s32.totalorder %s24, 0
      %p65 = por %p63, %p64
      %p66 = scmp.ne.s32.totalorder %s55, %s58
      %p67 = scmp.eq.s32.totalorder %s29, 1
      %p68 = por %p66, %p67
      %p69 = scmp.ne.s32.totalorder %s58, %s59
      %p70 = scmp.eq.s32.totalorder %s29, 0
      %p71 = por %p69, %p70
      %p72 = scmp.ne.s32.totalorder %s58, %s59
      %p73 = scmp.eq.s32.totalorder %s30, 1
      %p74 = por %p72, %p73
      %p76 = scmp.ne.s32.totalorder %s59, %s75
      %p77 = scmp.eq.s32.totalorder %s30, 0
      %p78 = por %p76, %p77
      %s80 = sadd.s32 %s79, 1
      %p83 = scmp.eq.s32.totalorder %s24, 1
      %p84 = scmp.ne.s32.totalorder %s79, %s81
      %p85 = scmp.eq.s32.totalorder %s24, 0
      %p86 = por %p84, %p85
      %p87 = scmp.ne.s32.totalorder %s79, %s81
      %p88 = scmp.eq.s32.totalorder %s29, 1
      %p89 = por %p87, %p88
      %p90 = scmp.ne.s32.totalorder %s81, %s82
      %p91 = scmp.eq.s32.totalorder %s29, 0
      %p92 = por %p90, %p91
      %p93 = scmp.ne.s32.totalorder %s81, %s82
      %p94 = scmp.eq.s32.totalorder %s30, 1
      %p95 = por %p93, %p94
      %p97 = scmp.ne.s32.totalorder %s82, %s96
      %p98 = scmp.eq.s32.totalorder %s30, 0
      %p99 = por %p97, %p98
      %s101 = sadd.s32 %s100, 1
      %p104 = scmp.eq.s32.totalorder %s24, 1
      %p105 = scmp.ne.s32.totalorder %s100, %s102
      %p106 = scmp.eq.s32.totalorder %s24, 0
      %p107 = por %p105, %p106
      %p108 = scmp.ne.s32.totalorder %s100, %s102
      %p109 = scmp.eq.s32.totalorder %s29, 1
      %p110 = por %p108, %p109
      %p111 = scmp.ne.s32.totalorder %s102, %s103
      %p112 = scmp.eq.s32.totalorder %s29, 0
      %p113 = por %p111, %p112
      %p114 = scmp.ne.s32.totalorder %s102, %s103
      %p115 = scmp.eq.s32.totalorder %s30, 1
      %p116 = por %p114, %p115
      %p118 = scmp.ne.s32.totalorder %s103, %s117
      %p119 = scmp.eq.s32.totalorder %s30, 0
      %p120 = por %p118, %p119
      %s122 = sadd.s32 %s121, 1
      %p125 = scmp.eq.s32.totalorder %s24, 1
      %p126 = scmp.ne.s32.totalorder %s121, %s123
      %p127 = scmp.eq.s32.totalorder %s24, 0
      %p128 = por %p126, %p127
      %p129 = scmp.ne.s32.totalorder %s121, %s123
      %p130 = scmp.eq.s32.totalorder %s29, 1
      %p131 = por %p129, %p130
      %p132 = scmp.ne.s32.totalorder %s123, %s124
      %p133 = scmp.eq.s32.totalorder %s29, 0
      %p134 = por %p132, %p133
      %p135 = scmp.ne.s32.totalorder %s123, %s124
      %p136 = scmp.eq.s32.totalorder %s30, 1
      %p137 = por %p135, %p136
      %p139 = scmp.ne.s32.totalorder %s124, %s138
      %p140 = scmp.eq.s32.totalorder %s30, 0
      %p141 = por %p139, %p140
      %s143 = sadd.s32 %s142, 1
      %p146 = scmp.eq.s32.totalorder %s24, 1
      %p147 = scmp.ne.s32.totalorder %s142, %s144
      %p148 = scmp.eq.s32.totalorder %s24, 0
      %p149 = por %p147, %p148
      %p150 = scmp.ne.s32.totalorder %s142, %s144
      %p151 = scmp.eq.s32.totalorder %s29, 1
      %p152 = por %p150, %p151
      %p153 = scmp.ne.s32.totalorder %s144, %s145
      %p154 = scmp.eq.s32.totalorder %s29, 0
      %p155 = por %p153, %p154
      %p156 = scmp.ne.s32.totalorder %s144, %s145
      %p157 = scmp.eq.s32.totalorder %s30, 1
      %p158 = por %p156, %p157
      %p160 = scmp.ne.s32.totalorder %s145, %s159
      %p161 = scmp.eq.s32.totalorder %s30, 0
      %p162 = por %p160, %p161
      %s164 = sadd.s32 %s163, 1
      %p167 = scmp.eq.s32.totalorder %s24, 1
      %p168 = scmp.ne.s32.totalorder %s163, %s165
      %p169 = scmp.eq.s32.totalorder %s24, 0
      %p170 = por %p168, %p169
      %p171 = scmp.ne.s32.totalorder %s163, %s165
      %p172 = scmp.eq.s32.totalorder %s29, 1
      %p173 = por %p171, %p172
      %p174 = scmp.ne.s32.totalorder %s165, %s166
      %p175 = scmp.eq.s32.totalorder %s29, 0
      %p176 = por %p174, %p175
      %p177 = scmp.ne.s32.totalorder %s165, %s166
      %p178 = scmp.eq.s32.totalorder %s30, 1
      %p179 = por %p177, %p178
      %p181 = scmp.ne.s32.totalorder %s166, %s180
      %p182 = scmp.eq.s32.totalorder %s30, 0
      %p183 = por %p181, %p182
      %s185 = sadd.s32 %s184, 1
      %p188 = scmp.eq.s32.totalorder %s24, 1
      %p189 = scmp.ne.s32.totalorder %s184, %s186
      %p190 = scmp.eq.s32.totalorder %s24, 0
      %p191 = por %p189, %p190
      %p192 = scmp.ne.s32.totalorder %s184, %s186
      %p193 = scmp.eq.s32.totalorder %s29, 1
      %p194 = por %p192, %p193
      %p195 = scmp.ne.s32.totalorder %s186, %s187
      %p196 = scmp.eq.s32.totalorder %s29, 0
      %p197 = por %p195, %p196
      %p198 = scmp.ne.s32.totalorder %s186, %s187
      %p199 = scmp.eq.s32.totalorder %s30, 1
      %p200 = por %p198, %p199
      %p202 = scmp.ne.s32.totalorder %s187, %s201
      %p203 = scmp.eq.s32.totalorder %s30, 0
      %p204 = por %p202, %p203
      %s206 = sadd.s32 %s205, 1
      %p209 = scmp.eq.s32.totalorder %s24, 1
      %p210 = scmp.ne.s32.totalorder %s205, %s207
      %p211 = scmp.eq.s32.totalorder %s24, 0
      %p212 = por %p210, %p211
      %p213 = scmp.ne.s32.totalorder %s205, %s207
      %p214 = scmp.eq.s32.totalorder %s29, 1
      %p215 = por %p213, %p214
      %p216 = scmp.ne.s32.totalorder %s207, %s208
      %p217 = scmp.eq.s32.totalorder %s29, 0
      %p218 = por %p216, %p217
      %p219 = scmp.ne.s32.totalorder %s207, %s208
      %p220 = scmp.eq.s32.totalorder %s30, 1
      %p221 = por %p219, %p220
      %p223 = scmp.ne.s32.totalorder %s208, %s222
      %p224 = scmp.eq.s32.totalorder %s30, 0
      %p225 = por %p223, %p224
      %s227 = sadd.s32 %s226, 1
      %p230 = scmp.eq.s32.totalorder %s24, 1
      %p231 = scmp.ne.s32.totalorder %s226, %s228
      %p232 = scmp.eq.s32.totalorder %s24, 0
      %p233 = por %p231, %p232
      %p234 = scmp.ne.s32.totalorder %s226, %s228
      %p235 = scmp.eq.s32.totalorder %s29, 1
      %p236 = por %p234, %p235
      %p237 = scmp.ne.s32.totalorder %s228, %s229
      %p238 = scmp.eq.s32.totalorder %s29, 0
      %p239 = por %p237, %p238
      %p240 = scmp.ne.s32.totalorder %s228, %s229
      %p241 = scmp.eq.s32.totalorder %s30, 1
      %p242 = por %p240, %p241
      %p244 = scmp.ne.s32.totalorder %s229, %s243
      %p245 = scmp.eq.s32.totalorder %s30, 0
      %p246 = por %p244, %p245
      %s248 = sadd.s32 %s247, 1
      %p251 = scmp.eq.s32.totalorder %s24, 1
      %p252 = scmp.ne.s32.totalorder %s247, %s249
      %p253 = scmp.eq.s32.totalorder %s24, 0
      %p254 = por %p252, %p253
      %p255 = scmp.ne.s32.totalorder %s247, %s249
      %p256 = scmp.eq.s32.totalorder %s29, 1
      %p257 = por %p255, %p256
      %p258 = scmp.ne.s32.totalorder %s249, %s250
      %p259 = scmp.eq.s32.totalorder %s29, 0
      %p260 = por %p258, %p259
      %p261 = scmp.ne.s32.totalorder %s249, %s250
      %p262 = scmp.eq.s32.totalorder %s30, 1
      %p263 = por %p261, %p262
      %p265 = scmp.ne.s32.totalorder %s250, %s264
      %p266 = scmp.eq.s32.totalorder %s30, 0
      %p267 = por %p265, %p266
      %s269 = sadd.s32 %s268, 1
      %p272 = scmp.eq.s32.totalorder %s24, 1
      %p273 = scmp.ne.s32.totalorder %s268, %s270
      %p274 = scmp.eq.s32.totalorder %s24, 0
      %p275 = por %p273, %p274
      %p276 = scmp.ne.s32.totalorder %s268, %s270
      %p277 = scmp.eq.s32.totalorder %s29, 1
      %p278 = por %p276, %p277
      %p279 = scmp.ne.s32.totalorder %s270, %s271
      %p280 = scmp.eq.s32.totalorder %s29, 0
      %p281 = por %p279, %p280
      %p282 = scmp.ne.s32.totalorder %s270, %s271
      %p283 = scmp.eq.s32.totalorder %s30, 1
      %p284 = por %p282, %p283
      %p286 = scmp.ne.s32.totalorder %s271, %s285
      %p287 = scmp.eq.s32.totalorder %s30, 0
      %p288 = por %p286, %p287
      %s290 = sadd.s32 %s289, 1
      %p293 = scmp.eq.s32.totalorder %s24, 1
      %p294 = scmp.ne.s32.totalorder %s289, %s291
      %p295 = scmp.eq.s32.totalorder %s24, 0
      %p296 = por %p294, %p295
      %p297 = scmp.ne.s32.totalorder %s289, %s291
      %p298 = scmp.eq.s32.totalorder %s29, 1
      %p299 = por %p297, %p298
      %p300 = scmp.ne.s32.totalorder %s291, %s292
      %p301 = scmp.eq.s32.totalorder %s29, 0
      %p302 = por %p300, %p301
      %p303 = scmp.ne.s32.totalorder %s291, %s292
      %p304 = scmp.eq.s32.totalorder %s30, 1
      %p305 = por %p303, %p304
      %p307 = scmp.ne.s32.totalorder %s292, %s306
      %p308 = scmp.eq.s32.totalorder %s30, 0
      %p309 = por %p307, %p308
      %s311 = sadd.s32 %s310, 1
      %p314 = scmp.eq.s32.totalorder %s24, 1
      %p315 = scmp.ne.s32.totalorder %s310, %s312
      %p316 = scmp.eq.s32.totalorder %s24, 0
      %p317 = por %p315, %p316
      %p318 = scmp.ne.s32.totalorder %s310, %s312
      %p319 = scmp.eq.s32.totalorder %s29, 1
      %p320 = por %p318, %p319
      %p321 = scmp.ne.s32.totalorder %s312, %s313
      %p322 = scmp.eq.s32.totalorder %s29, 0
      %p323 = por %p321, %p322
      %p324 = scmp.ne.s32.totalorder %s312, %s313
      %p325 = scmp.eq.s32.totalorder %s30, 1
      %p326 = por %p324, %p325
      %p328 = scmp.ne.s32.totalorder %s313, %s327
      %p329 = scmp.eq.s32.totalorder %s30, 0
      %p330 = por %p328, %p329
      %s331 = ssub.s32 %s24, %s31
      %p332 = scmp.eq.s32.totalorder %s331, 0
      %s334 = sadd.s32 %s333, 1
      %s335 = scalar_select %p332, %s333, %s334
      %p338 = pneg %p332
      %p339 = scmp.eq.s32.totalorder %s24, 1
      %p340 = por %p338, %p339
      %p341 = scmp.ne.s32.totalorder %s333, %s336
      %p342 = scmp.eq.s32.totalorder %s24, 0
      %p343 = por %p341, %p342
      %p344 = scmp.ne.s32.totalorder %s333, %s336
      %p345 = scmp.eq.s32.totalorder %s29, 1
      %p346 = por %p344, %p345
      %p347 = scmp.ne.s32.totalorder %s336, %s337
      %p348 = scmp.eq.s32.totalorder %s29, 0
      %p349 = por %p347, %p348
      %p350 = scmp.ne.s32.totalorder %s336, %s337
      %p351 = scmp.eq.s32.totalorder %s30, 1
      %p352 = por %p350, %p351
      %p354 = scmp.ne.s32.totalorder %s337, %s353
      %p355 = scmp.eq.s32.totalorder %s30, 0
      %p356 = por %p354, %p355
      %p357 = scmp.le.s32.totalorder 1, %s24
      %p358 = scmp.lt.s32.totalorder %s24, 3
      %p359 = pnand %p357, %p358
      %p360 = pneg %p359
      // Predicated region
      $region9: #{tpu_custom_call.1} parent=5 // pred_check
        _
      $region10: #{tpu_custom_call.1} parent=5 // pred_check_branch
        %362 = sbr.rel (%p359) target = $region12
      $region11: #{tpu_custom_call.1} parent=5 // pred_region
        %s363 = ssub.s32 %s24, 1
        // Predicated region
        $region13: #{tpu_custom_call.1} parent=11 // pred_check
          %p364 = pneg %p45
        $region14: #{tpu_custom_call.1} parent=11 // pred_check_branch
          %366 = sbr.rel (%p364) target = $region16
        $region15: #{tpu_custom_call.1} parent=11 // pred_region
          %s368 = ssub.s32 128, 128
          %369 = vsyncadd [#allocation4], %s368
          %s371 = sshll.u32 %s0, 4
          %s372 = int_to_ptr.vmem [resolvable:$true] %s371
          %374 = dma.vmem_to_smem %s372, 128, [#allocation2], [#allocation4]
        $region16: #{tpu_custom_call.1} parent=11 // pred_fallthru
          _
        // Predicated region
        $region17: #{tpu_custom_call.1} parent=11 // pred_check
          %p375 = pneg %p92
        $region18: #{tpu_custom_call.1} parent=11 // pred_check_branch
          %377 = sbr.rel (%p375) target = $region20
        $region19: #{tpu_custom_call.1} parent=11 // pred_region
          _
        $region20: #{tpu_custom_call.1} parent=11 // pred_fallthru
          _
        // Predicated region
        $region21: #{tpu_custom_call.1} parent=11 // pred_check
          %p378 = pneg %p113
        $region22: #{tpu_custom_call.1} parent=11 // pred_check_branch
          %380 = sbr.rel (%p378) target = $region24
        $region23: #{tpu_custom_call.1} parent=11 // pred_region
          _
        $region24: #{tpu_custom_call.1} parent=11 // pred_fallthru
          _
        // Predicated region
        $region25: #{tpu_custom_call.1} parent=11 // pred_check
          %p381 = pneg %p134
        $region26: #{tpu_custom_call.1} parent=11 // pred_check_branch
          %383 = sbr.rel (%p381) target = $region28
        $region27: #{tpu_custom_call.1} parent=11 // pred_region
          _
        $region28: #{tpu_custom_call.1} parent=11 // pred_fallthru
          _
        // Predicated region
        $region29: #{tpu_custom_call.1} parent=11 // pred_check
          %p384 = pneg %p155
        $region30: #{tpu_custom_call.1} parent=11 // pred_check_branch
          %386 = sbr.rel (%p384) target = $region32
        $region31: #{tpu_custom_call.1} parent=11 // pred_region
          _
        $region32: #{tpu_custom_call.1} parent=11 // pred_fallthru
          _
        // Predicated region
        $region33: #{tpu_custom_call.1} parent=11 // pred_check
          %p387 = pneg %p176
        $region34: #{tpu_custom_call.1} parent=11 // pred_check_branch
          %389 = sbr.rel (%p387) target = $region36
        $region35: #{tpu_custom_call.1} parent=11 // pred_region
          _
        $region36: #{tpu_custom_call.1} parent=11 // pred_fallthru
          _
        // Predicated region
        $region37: #{tpu_custom_call.1} parent=11 // pred_check
          %p390 = pneg %p197
        $region38: #{tpu_custom_call.1} parent=11 // pred_check_branch
          %392 = sbr.rel (%p390) target = $region40
        $region39: #{tpu_custom_call.1} parent=11 // pred_region
          _
        $region40: #{tpu_custom_call.1} parent=11 // pred_fallthru
          _
        // Predicated region
        $region41: #{tpu_custom_call.1} parent=11 // pred_check
          %p393 = pneg %p218
        $region42: #{tpu_custom_call.1} parent=11 // pred_check_branch
          %395 = sbr.rel (%p393) target = $region44
        $region43: #{tpu_custom_call.1} parent=11 // pred_region
          _
        $region44: #{tpu_custom_call.1} parent=11 // pred_fallthru
          _
        // Predicated region
        $region45: #{tpu_custom_call.1} parent=11 // pred_check
          %p396 = pneg %p239
        $region46: #{tpu_custom_call.1} parent=11 // pred_check_branch
          %398 = sbr.rel (%p396) target = $region48
        $region47: #{tpu_custom_call.1} parent=11 // pred_region
          _
        $region48: #{tpu_custom_call.1} parent=11 // pred_fallthru
          _
        // Predicated region
        $region49: #{tpu_custom_call.1} parent=11 // pred_check
          %p399 = pneg %p260
        $region50: #{tpu_custom_call.1} parent=11 // pred_check_branch
          %401 = sbr.rel (%p399) target = $region52
        $region51: #{tpu_custom_call.1} parent=11 // pred_region
          _
        $region52: #{tpu_custom_call.1} parent=11 // pred_fallthru
          _
        // Predicated region
        $region53: #{tpu_custom_call.1} parent=11 // pred_check
          %p402 = pneg %p281
        $region54: #{tpu_custom_call.1} parent=11 // pred_check_branch
          %404 = sbr.rel (%p402) target = $region56
        $region55: #{tpu_custom_call.1} parent=11 // pred_region
          _
        $region56: #{tpu_custom_call.1} parent=11 // pred_fallthru
          _
        // Predicated region
        $region57: #{tpu_custom_call.1} parent=11 // pred_check
          %p405 = pneg %p302
        $region58: #{tpu_custom_call.1} parent=11 // pred_check_branch
          %407 = sbr.rel (%p405) target = $region60
        $region59: #{tpu_custom_call.1} parent=11 // pred_region
          _
        $region60: #{tpu_custom_call.1} parent=11 // pred_fallthru
          _
        // Predicated region
        $region61: #{tpu_custom_call.1} parent=11 // pred_check
          %p408 = pneg %p323
        $region62: #{tpu_custom_call.1} parent=11 // pred_check_branch
          %410 = sbr.rel (%p408) target = $region64
        $region63: #{tpu_custom_call.1} parent=11 // pred_region
          _
        $region64: #{tpu_custom_call.1} parent=11 // pred_fallthru
          _
      $region12: #{tpu_custom_call.1} parent=5 // pred_fallthru
        _
      %p411 = scmp.lt.s32.totalorder %s24, 2
      // Predicated region
      $region65: #{tpu_custom_call.1} parent=5 // pred_check
        %p412 = pneg %p411
      $region66: #{tpu_custom_call.1} parent=5 // pred_check_branch
        %414 = sbr.rel (%p412) target = $region68
      $region67: #{tpu_custom_call.1} parent=5 // pred_region
        // Predicated region
        $region69: #{tpu_custom_call.1} parent=67 // pred_check
          %p415 = pneg %p65
        $region70: #{tpu_custom_call.1} parent=67 // pred_check_branch
          %417 = sbr.rel (%p415) target = $region72
        $region71: #{tpu_custom_call.1} parent=67 // pred_region
          %p418 = scmp.lt.s32.totalorder %s24, 1
          %s419 = scalar_select %p418, %s24, 1
          %s420 = smul.addr %s419, 8
          %s421 = scalar_lea.vmem %s1, %s420
        $region72: #{tpu_custom_call.1} parent=67 // pred_fallthru
          _
      $region68: #{tpu_custom_call.1} parent=5 // pred_fallthru
        _
      %p422 = scmp.le.s32.totalorder 1, %s24
      %p423 = scmp.lt.s32.totalorder %s24, 3
      %p424 = pnand %p422, %p423
      %p425 = pneg %p424
      // Predicated region
      $region73: #{tpu_custom_call.1} parent=5 // pred_check
        _
      $region74: #{tpu_custom_call.1} parent=5 // pred_check_branch
        %427 = sbr.rel (%p424) target = $region76
      $region75: #{tpu_custom_call.1} parent=5 // pred_region
        %s428 = ssub.s32 %s24, 1
        // Predicated region
        $region77: #{tpu_custom_call.1} parent=75 // pred_check
          %p429 = pneg %p45
        $region78: #{tpu_custom_call.1} parent=75 // pred_check_branch
          %431 = sbr.rel (%p429) target = $region80
        $region79: #{tpu_custom_call.1} parent=75 // pred_region
          %432 = dma.done [#allocation4], 128
        $region80: #{tpu_custom_call.1} parent=75 // pred_fallthru
          _
        %433 = sfence
        %p434 = pneg %p45
        %p435 = pneg %p42
        %p436 = scmp.lt.s32.totalorder %s29, 1
        %s437 = scalar_select %p436, %s29, 1
        %s438 = smul.addr %s437, 8
        %s439 = scalar_lea.vmem %s1, %s438
        %p440 = pneg %p71
        %p441 = pneg %p68
        %p442 = pneg %p92
        %p443 = pneg %p89
        %p444 = pneg %p113
        %p445 = pneg %p110
        %p446 = pneg %p134
        %p447 = pneg %p131
        %p448 = pneg %p155
        %p449 = pneg %p152
        %p450 = pneg %p176
        %p451 = pneg %p173
        %p452 = pneg %p197
        %p453 = pneg %p194
        %p454 = pneg %p218
        %p455 = pneg %p215
        %p456 = pneg %p239
        %p457 = pneg %p236
        %p458 = pneg %p260
        %p459 = pneg %p257
        %p460 = pneg %p281
        %p461 = pneg %p278
        %p462 = pneg %p302
        %p463 = pneg %p299
        %p464 = pneg %p323
        %p465 = pneg %p320
        %p466 = pneg %p349
        %p467 = pneg %p346
        %s468 = sand.u32 %s336, 1
        %s469 = scalar_lea.sflag [#allocation3], %s468
        %s470 = sand.u32 %s336, 1
        %s471 = smul.addr %s470, 8
        %s472 = scalar_lea.vmem [#allocation5], %s471
        %p473 = scmp.lt.s32.totalorder %s29, 1
        %s474 = scalar_select %p473, %s29, 1
        %s475 = smul.addr %s474, 8
        %s476 = scalar_lea.vmem %s1, %s475
        %v477 = vld [vmem:[%s476] sm:$0xff]
        %v478 = vld [vmem:[%s2] sm:$0x1]
        %v479 = vld [vmem:[%s3] sm:$0x1]
        %vm480 = vcmask 261120
        %v481 = vsel %vm480, %v477, 0.0
        %482 = vadd.xlane.f32.xlu0 %v481
        %v483 = vpop.xlane.xlu0 %482
        %v484 = vrcp.pop 32.0
        %v485 = vmul.f32 %v483, %v484
        %v486 = vsub.f32 %v477, %v485
        %v487 = vmul.f32 %v486, %v486
        %v488 = vsel %vm480, %v487, 0.0
        %489 = vadd.xlane.f32.xlu0 %v488
        %v490 = vpop.xlane.xlu0 %489
        %v491 = vmul.f32 %v490, %v484
        %v492 = vadd.f32 %v491, 1e-05
        %v493 = vrsqrt.pop %v492
        %v494 = vmul.f32 %v486, %v493
        %v496 = vlaneseq
        %v497 = vshrl.u32 %v496, 7
        %v498 = vsub.s32 0, %v497
        %v499 = vrot.slane %v478, %v498
        %v501 = vmul.f32 %v494, %v499
        %v503 = vlaneseq
        %v504 = vshrl.u32 %v503, 7
        %v505 = vsub.s32 0, %v504
        %v506 = vrot.slane %v479, %v505
        %v508 = vadd.f32 %v501, %v506
        %v509 = vld [vmem:[%s4] sm:$0xff]
        %v510 = vld [vmem:[%s4 + $0x8] sm:$0xff]
        %v511 = vld [vmem:[%s4 + $0x10] sm:$0xff]
        %v512 = vld [vmem:[%s4 + $0x18] sm:$0xff]
        %v513 = vld [vmem:[%s5] sm:$0x1]
        %v515 = vlaneseq
        %v516 = vshrl.u32 %v515, 7
        %v517 = vsub.s32 0, %v516
        %v518 = vrot.slane %v513, %v517
        %v521 = vsel %vm480, %v508, 0
        %523 = vmatprep.subr.mxu0 0.0
        %524 = vmatpush1.msra.mxu0 %v509
        %525 = vmatprep.subr.mxu0 0.0
        %526 = vmatpush1.msra.mxu0 %v510
        %527 = vmatprep.subr.mxu0 0.0
        %528 = vmatpush1.msra.mxu0 %v511
        %529 = vmatprep.subr.mxu0 0.0
        %530 = vmatpush1.msra.mxu0 %v512
        %531 = vmatprep.subr.mxu0 0.0
        %532 = vmatpush1.msra.mxu0 0.0
        %533 = vmatprep.subr.mxu0 0.0
        %534 = vmatpush1.msra.mxu0 0.0
        %535 = vmatprep.subr.mxu0 0.0
        %536 = vmatpush1.msra.mxu0 0.0
        %537 = vmatprep.subr.mxu0 0.0
        %538 = vmatpush1.msra.mxu0 0.0
        %539 = vmatprep.subr.mxu0 0.0
        %540 = vmatpush1.msra.mxu0 0.0
        %541 = vmatprep.subr.mxu0 0.0
        %542 = vmatpush1.msra.mxu0 0.0
        %543 = vmatprep.subr.mxu0 0.0
        %544 = vmatpush1.msra.mxu0 0.0
        %545 = vmatprep.subr.mxu0 0.0
        %546 = vmatpush1.msra.mxu0 0.0
        %547 = vmatprep.subr.mxu0 0.0
        %548 = vmatpush1.msra.mxu0 0.0
        %549 = vmatprep.subr.mxu0 0.0
        %550 = vmatpush1.msra.mxu0 0.0
        %551 = vmatprep.subr.mxu0 0.0
        %552 = vmatpush1.msra.mxu0 0.0
        %553 = vmatprep.subr.mxu0 0.0
        %554 = vmatpush1.msra.mxu0 0.0
        %555 = vmatprep.subr.mxu0 0.0
        %556 = vmatpush1.msra.mxu0 0.0
        %557 = vmatprep.subr.mxu0 0.0
        %558 = vmatpush1.msra.mxu0 0.0
        %559 = vmatprep.subr.mxu0 0.0
        %560 = vmatpush1.msra.mxu0 0.0
        %561 = vmatprep.subr.mxu0 0.0
        %562 = vmatpush1.msra.mxu0 0.0
        %563 = vmatprep.subr.mxu0 0.0
        %564 = vmatpush1.msra.mxu0 0.0
        %565 = vmatprep.subr.mxu0 0.0
        %566 = vmatpush1.msra.mxu0 0.0
        %567 = vmatprep.subr.mxu0 0.0
        %568 = vmatpush1.msra.mxu0 0.0
        %569 = vmatprep.subr.mxu0 0.0
        %570 = vmatpush1.msra.mxu0 0.0
        %571 = vmatprep.subr.mxu0 0.0
        %572 = vmatpush1.msra.mxu0 0.0
        %573 = vmatprep.subr.mxu0 0.0
        %574 = vmatpush1.msra.mxu0 0.0
        %575 = vmatprep.subr.mxu0 0.0
        %576 = vmatpush1.msra.mxu0 0.0
        %577 = vmatprep.subr.mxu0 0.0
        %578 = vmatpush1.msra.mxu0 0.0
        %579 = vmatprep.subr.mxu0 0.0
        %580 = vmatpush1.msra.mxu0 0.0
        %581 = vmatprep.subr.mxu0 0.0
        %582 = vmatpush1.msra.mxu0 0.0
        %583 = vmatprep.subr.mxu0 0.0
        %584 = vmatpush1.msra.mxu0 0.0
        %585 = vmatprep.subr.mxu0 0.0
        %586 = vmatpush1.msra.mxu0 0.0
        %587 = vmatprep.mubr.f32.mxu0 0.0
        %588 = vmatmul.mubr.f32.gmra.mrb[0].mxu0 %v521
        %v589 = vpop.f32.mrb[0].mxu0
        %v590 = vadd.f32 %v518, %v589
        %v591 = vpop.f32.mrb[0].mxu0
        %592 = vdwg.mxu0
        %v593 = vmul.f32 %v590, 0.35355338
        %595 = vrot.lane.b32.xlu0 %v593, 120
        %v596 = vpop.permute.xlu0 %595
        %597 = vrot.lane.b32.xlu0 %v593, 112
        %v598 = vpop.permute.xlu0 %597
        %599 = vrot.lane.b32.xlu0 %v593, 104
        %v600 = vpop.permute.xlu0 %599
        %602 = vrot.lane.b32.xlu0 %v590, 120
        %v603 = vpop.permute.xlu0 %602
        %604 = vrot.lane.b32.xlu0 %v590, 112
        %v605 = vpop.permute.xlu0 %604
        %606 = vrot.lane.b32.xlu0 %v590, 104
        %v607 = vpop.permute.xlu0 %606
        %v608 = vlaneseq
        %v609 = vshrl.u32 %v608, 7
        %v610 = vlaneseq
        %v611 = vand.u32 %v610, 127
        %v612 = vsub.s32 %v609, %v611
        %vm613 = vcmp.gt.s32.totalorder %v612, 0
        %v614 = vsel %vm613, %v612, 0
        %vm615 = vcmp.gt.s32.totalorder %v614, 1
        %v616 = vsel %vm615, %v614, 1
        %v617 = vcvt.s32.f32 %v616
        %v618 = vrcp.pop 4.0
        %v619 = vmul.f32 %v617, %v618
        %v620 = vlog2.pop %v619
        %v621 = vmul.f32 %v620, 0.6931472
        %v622 = vrcp.pop 3.465736
        %v623 = vmul.f32 %v621, %v622
        %v624 = vmul.f32 %v623, 4.0
        %v625 = vcvt.f32.s32.to.zero.pseudo %v624
        %v626 = vadd.s32 %v625, 4
        %vm627 = vcmp.lt.s32.totalorder %v626, 7
        %v628 = vsel %vm627, %v626, 7
        %vm629 = vcmp.lt.s32.totalorder %v614, 4
        %v630 = vsel %vm629, %v614, %v628
        %vm631 = vcmp.le.s32.totalorder %v611, %v609
        %vm632 = vcmp.eq.s32.totalorder %v630, 0
        %s633 = sld [smem:[#allocation2]]
        %v634 = vstv %s633
        %v635 = vsel %vm632, %v634, 0.0
        %v636 = vadd.f32 %v635, 0.0
        %vm637 = vcmp.eq.s32.totalorder %v630, 1
        %s638 = sld [smem:[#allocation2 + $0x80]]
        %v639 = vstv %s638
        %v640 = vsel %vm637, %v639, 0.0
        %v641 = vadd.f32 %v636, %v640
        %vm642 = vcmp.eq.s32.totalorder %v630, 2
        %s643 = sld [smem:[#allocation2 + $0x100]]
        %v644 = vstv %s643
        %v645 = vsel %vm642, %v644, 0.0
        %v646 = vadd.f32 %v641, %v645
        %vm647 = vcmp.eq.s32.totalorder %v630, 3
        %s648 = sld [smem:[#allocation2 + $0x180]]
        %v649 = vstv %s648
        %v650 = vsel %vm647, %v649, 0.0
        %v651 = vadd.f32 %v646, %v650
        %vm652 = vcmp.eq.s32.totalorder %v630, 4
        %s653 = sld [smem:[#allocation2 + $0x200]]
        %v654 = vstv %s653
        %v655 = vsel %vm652, %v654, 0.0
        %v656 = vadd.f32 %v651, %v655
        %vm657 = vcmp.eq.s32.totalorder %v630, 5
        %s658 = sld [smem:[#allocation2 + $0x280]]
        %v659 = vstv %s658
        %v660 = vsel %vm657, %v659, 0.0
        %v661 = vadd.f32 %v656, %v660
        %vm662 = vcmp.eq.s32.totalorder %v630, 6
        %s663 = sld [smem:[#allocation2 + $0x300]]
        %v664 = vstv %s663
        %v665 = vsel %vm662, %v664, 0.0
        %v666 = vadd.f32 %v661, %v665
        %vm667 = vcmp.eq.s32.totalorder %v630, 7
        %s668 = sld [smem:[#allocation2 + $0x380]]
        %v669 = vstv %s668
        %v670 = vsel %vm667, %v669, 0.0
        %v671 = vadd.f32 %v666, %v670
        %s672 = sld [smem:[#allocation2 + $0x1]]
        %v673 = vstv %s672
        %v674 = vsel %vm632, %v673, 0.0
        %v675 = vadd.f32 %v674, 0.0
        %s676 = sld [smem:[#allocation2 + $0x81]]
        %v677 = vstv %s676
        %v678 = vsel %vm637, %v677, 0.0
        %v679 = vadd.f32 %v675, %v678
        %s680 = sld [smem:[#allocation2 + $0x101]]
        %v681 = vstv %s680
        %v682 = vsel %vm642, %v681, 0.0
        %v683 = vadd.f32 %v679, %v682
        %s684 = sld [smem:[#allocation2 + $0x181]]
        %v685 = vstv %s684
        %v686 = vsel %vm647, %v685, 0.0
        %v687 = vadd.f32 %v683, %v686
        %s688 = sld [smem:[#allocation2 + $0x201]]
        %v689 = vstv %s688
        %v690 = vsel %vm652, %v689, 0.0
        %v691 = vadd.f32 %v687, %v690
        %s692 = sld [smem:[#allocation2 + $0x281]]
        %v693 = vstv %s692
        %v694 = vsel %vm657, %v693, 0.0
        %v695 = vadd.f32 %v691, %v694
        %s696 = sld [smem:[#allocation2 + $0x301]]
        %v697 = vstv %s696
        %v698 = vsel %vm662, %v697, 0.0
        %v699 = vadd.f32 %v695, %v698
        %s700 = sld [smem:[#allocation2 + $0x381]]
        %v701 = vstv %s700
        %v702 = vsel %vm667, %v701, 0.0
        %v703 = vadd.f32 %v699, %v702
        %s704 = sld [smem:[#allocation2 + $0x2]]
        %v705 = vstv %s704
        %v706 = vsel %vm632, %v705, 0.0
        %v707 = vadd.f32 %v706, 0.0
        %s708 = sld [smem:[#allocation2 + $0x82]]
        %v709 = vstv %s708
        %v710 = vsel %vm637, %v709, 0.0
        %v711 = vadd.f32 %v707, %v710
        %s712 = sld [smem:[#allocation2 + $0x102]]
        %v713 = vstv %s712
        %v714 = vsel %vm642, %v713, 0.0
        %v715 = vadd.f32 %v711, %v714
        %s716 = sld [smem:[#allocation2 + $0x182]]
        %v717 = vstv %s716
        %v718 = vsel %vm647, %v717, 0.0
        %v719 = vadd.f32 %v715, %v718
        %s720 = sld [smem:[#allocation2 + $0x202]]
        %v721 = vstv %s720
        %v722 = vsel %vm652, %v721, 0.0
        %v723 = vadd.f32 %v719, %v722
        %s724 = sld [smem:[#allocation2 + $0x282]]
        %v725 = vstv %s724
        %v726 = vsel %vm657, %v725, 0.0
        %v727 = vadd.f32 %v723, %v726
        %s728 = sld [smem:[#allocation2 + $0x302]]
        %v729 = vstv %s728
        %v730 = vsel %vm662, %v729, 0.0
        %v731 = vadd.f32 %v727, %v730
        %s732 = sld [smem:[#allocation2 + $0x382]]
        %v733 = vstv %s732
        %v734 = vsel %vm667, %v733, 0.0
        %v735 = vadd.f32 %v731, %v734
        %s736 = sld [smem:[#allocation2 + $0x3]]
        %v737 = vstv %s736
        %v738 = vsel %vm632, %v737, 0.0
        %v739 = vadd.f32 %v738, 0.0
        %s740 = sld [smem:[#allocation2 + $0x83]]
        %v741 = vstv %s740
        %v742 = vsel %vm637, %v741, 0.0
        %v743 = vadd.f32 %v739, %v742
        %s744 = sld [smem:[#allocation2 + $0x103]]
        %v745 = vstv %s744
        %v746 = vsel %vm642, %v745, 0.0
        %v747 = vadd.f32 %v743, %v746
        %s748 = sld [smem:[#allocation2 + $0x183]]
        %v749 = vstv %s748
        %v750 = vsel %vm647, %v749, 0.0
        %v751 = vadd.f32 %v747, %v750
        %s752 = sld [smem:[#allocation2 + $0x203]]
        %v753 = vstv %s752
        %v754 = vsel %vm652, %v753, 0.0
        %v755 = vadd.f32 %v751, %v754
        %s756 = sld [smem:[#allocation2 + $0x283]]
        %v757 = vstv %s756
        %v758 = vsel %vm657, %v757, 0.0
        %v759 = vadd.f32 %v755, %v758
        %s760 = sld [smem:[#allocation2 + $0x303]]
        %v761 = vstv %s760
        %v762 = vsel %vm662, %v761, 0.0
        %v763 = vadd.f32 %v759, %v762
        %s764 = sld [smem:[#allocation2 + $0x383]]
        %v765 = vstv %s764
        %v766 = vsel %vm667, %v765, 0.0
        %v767 = vadd.f32 %v763, %v766
        %768 = vrot.lane.b32.xlu0 %v590, 96
        %v769 = vpop.permute.xlu0 %768
        %vm770 = vcmask 64512
        %v771 = vsel %vm770, %v593, 0
        %v773 = vsel %vm770, %v769, 0
        %775 = vmatprep.subr.mxu0 0.0
        %776 = vmatpush1.xpose.msra.mxu0 %v773
        %777 = vmatprep.subr.mxu0 0.0
        %778 = vmatpush1.xpose.msra.mxu0 0.0
        %779 = vmatprep.subr.mxu0 0.0
        %780 = vmatpush1.xpose.msra.mxu0 0.0
        %781 = vmatprep.subr.mxu0 0.0
        %782 = vmatpush1.xpose.msra.mxu0 0.0
        %783 = vmatprep.subr.mxu0 0.0
        %784 = vmatpush1.xpose.msra.mxu0 0.0
        %785 = vmatprep.subr.mxu0 0.0
        %786 = vmatpush1.xpose.msra.mxu0 0.0
        %787 = vmatprep.subr.mxu0 0.0
        %788 = vmatpush1.xpose.msra.mxu0 0.0
        %789 = vmatprep.subr.mxu0 0.0
        %790 = vmatpush1.xpose.msra.mxu0 0.0
        %791 = vmatprep.subr.mxu0 0.0
        %792 = vmatpush1.xpose.msra.mxu0 0.0
        %793 = vmatprep.subr.mxu0 0.0
        %794 = vmatpush1.xpose.msra.mxu0 0.0
        %795 = vmatprep.subr.mxu0 0.0
        %796 = vmatpush1.xpose.msra.mxu0 0.0
        %797 = vmatprep.subr.mxu0 0.0
        %798 = vmatpush1.xpose.msra.mxu0 0.0
        %799 = vmatprep.subr.mxu0 0.0
        %800 = vmatpush1.xpose.msra.mxu0 0.0
        %801 = vmatprep.subr.mxu0 0.0
        %802 = vmatpush1.xpose.msra.mxu0 0.0
        %803 = vmatprep.subr.mxu0 0.0
        %804 = vmatpush1.xpose.msra.mxu0 0.0
        %805 = vmatprep.subr.mxu0 0.0
        %806 = vmatpush1.xpose.msra.mxu0 0.0
        %807 = vmatprep.subr.mxu0 0.0
        %808 = vmatpush1.xpose.msra.mxu0 0.0
        %809 = vmatprep.subr.mxu0 0.0
        %810 = vmatpush1.xpose.msra.mxu0 0.0
        %811 = vmatprep.subr.mxu0 0.0
        %812 = vmatpush1.xpose.msra.mxu0 0.0
        %813 = vmatprep.subr.mxu0 0.0
        %814 = vmatpush1.xpose.msra.mxu0 0.0
        %815 = vmatprep.subr.mxu0 0.0
        %816 = vmatpush1.xpose.msra.mxu0 0.0
        %817 = vmatprep.subr.mxu0 0.0
        %818 = vmatpush1.xpose.msra.mxu0 0.0
        %819 = vmatprep.subr.mxu0 0.0
        %820 = vmatpush1.xpose.msra.mxu0 0.0
        %821 = vmatprep.subr.mxu0 0.0
        %822 = vmatpush1.xpose.msra.mxu0 0.0
        %823 = vmatprep.subr.mxu0 0.0
        %824 = vmatpush1.xpose.msra.mxu0 0.0
        %825 = vmatprep.subr.mxu0 0.0
        %826 = vmatpush1.xpose.msra.mxu0 0.0
        %827 = vmatprep.subr.mxu0 0.0
        %828 = vmatpush1.xpose.msra.mxu0 0.0
        %829 = vmatprep.subr.mxu0 0.0
        %830 = vmatpush1.xpose.msra.mxu0 0.0
        %831 = vmatprep.subr.mxu0 0.0
        %832 = vmatpush1.xpose.msra.mxu0 0.0
        %833 = vmatprep.subr.mxu0 0.0
        %834 = vmatpush1.xpose.msra.mxu0 0.0
        %835 = vmatprep.subr.mxu0 0.0
        %836 = vmatpush1.xpose.msra.mxu0 0.0
        %837 = vmatprep.subr.mxu0 0.0
        %838 = vmatpush1.xpose.msra.mxu0 0.0
        %839 = vmatprep.mubr.f32.mxu0 0.0
        %840 = vmatmul.mubr.f32.gmra.mrb[0].mxu0 %v771
        %v841 = vpop.f32.mrb[0].mxu0
        %v842 = vadd.f32 %v671, %v841
        %v843 = vpop.f32.mrb[0].mxu0
        %844 = vdwg.mxu0
        %845 = vrot.lane.b32.xlu0 %v603, 96
        %v846 = vpop.permute.xlu0 %845
        %v847 = vsel %vm770, %v596, 0
        %v849 = vsel %vm770, %v846, 0
        %851 = vmatprep.subr.mxu0 0.0
        %852 = vmatpush1.xpose.msra.mxu0 %v849
        %853 = vmatprep.subr.mxu0 0.0
        %854 = vmatpush1.xpose.msra.mxu0 0.0
        %855 = vmatprep.subr.mxu0 0.0
        %856 = vmatpush1.xpose.msra.mxu0 0.0
        %857 = vmatprep.subr.mxu0 0.0
        %858 = vmatpush1.xpose.msra.mxu0 0.0
        %859 = vmatprep.subr.mxu0 0.0
        %860 = vmatpush1.xpose.msra.mxu0 0.0
        %861 = vmatprep.subr.mxu0 0.0
        %862 = vmatpush1.xpose.msra.mxu0 0.0
        %863 = vmatprep.subr.mxu0 0.0
        %864 = vmatpush1.xpose.msra.mxu0 0.0
        %865 = vmatprep.subr.mxu0 0.0
        %866 = vmatpush1.xpose.msra.mxu0 0.0
        %867 = vmatprep.subr.mxu0 0.0
        %868 = vmatpush1.xpose.msra.mxu0 0.0
        %869 = vmatprep.subr.mxu0 0.0
        %870 = vmatpush1.xpose.msra.mxu0 0.0
        %871 = vmatprep.subr.mxu0 0.0
        %872 = vmatpush1.xpose.msra.mxu0 0.0
        %873 = vmatprep.subr.mxu0 0.0
        %874 = vmatpush1.xpose.msra.mxu0 0.0
        %875 = vmatprep.subr.mxu0 0.0
        %876 = vmatpush1.xpose.msra.mxu0 0.0
        %877 = vmatprep.subr.mxu0 0.0
        %878 = vmatpush1.xpose.msra.mxu0 0.0
        %879 = vmatprep.subr.mxu0 0.0
        %880 = vmatpush1.xpose.msra.mxu0 0.0
        %881 = vmatprep.subr.mxu0 0.0
        %882 = vmatpush1.xpose.msra.mxu0 0.0
        %883 = vmatprep.subr.mxu0 0.0
        %884 = vmatpush1.xpose.msra.mxu0 0.0
        %885 = vmatprep.subr.mxu0 0.0
        %886 = vmatpush1.xpose.msra.mxu0 0.0
        %887 = vmatprep.subr.mxu0 0.0
        %888 = vmatpush1.xpose.msra.mxu0 0.0
        %889 = vmatprep.subr.mxu0 0.0
        %890 = vmatpush1.xpose.msra.mxu0 0.0
        %891 = vmatprep.subr.mxu0 0.0
        %892 = vmatpush1.xpose.msra.mxu0 0.0
        %893 = vmatprep.subr.mxu0 0.0
        %894 = vmatpush1.xpose.msra.mxu0 0.0
        %895 = vmatprep.subr.mxu0 0.0
        %896 = vmatpush1.xpose.msra.mxu0 0.0
        %897 = vmatprep.subr.mxu0 0.0
        %898 = vmatpush1.xpose.msra.mxu0 0.0
        %899 = vmatprep.subr.mxu0 0.0
        %900 = vmatpush1.xpose.msra.mxu0 0.0
        %901 = vmatprep.subr.mxu0 0.0
        %902 = vmatpush1.xpose.msra.mxu0 0.0
        %903 = vmatprep.subr.mxu0 0.0
        %904 = vmatpush1.xpose.msra.mxu0 0.0
        %905 = vmatprep.subr.mxu0 0.0
        %906 = vmatpush1.xpose.msra.mxu0 0.0
        %907 = vmatprep.subr.mxu0 0.0
        %908 = vmatpush1.xpose.msra.mxu0 0.0
        %909 = vmatprep.subr.mxu0 0.0
        %910 = vmatpush1.xpose.msra.mxu0 0.0
        %911 = vmatprep.subr.mxu0 0.0
        %912 = vmatpush1.xpose.msra.mxu0 0.0
        %913 = vmatprep.subr.mxu0 0.0
        %914 = vmatpush1.xpose.msra.mxu0 0.0
        %915 = vmatprep.mubr.f32.mxu0 0.0
        %916 = vmatmul.mubr.f32.gmra.mrb[0].mxu0 %v847
        %v917 = vpop.f32.mrb[0].mxu0
        %v918 = vadd.f32 %v703, %v917
        %v919 = vpop.f32.mrb[0].mxu0
        %920 = vdwg.mxu0
        %921 = vrot.lane.b32.xlu0 %v605, 96
        %v922 = vpop.permute.xlu0 %921
        %v923 = vsel %vm770, %v598, 0
        %v925 = vsel %vm770, %v922, 0
        %927 = vmatprep.subr.mxu0 0.0
        %928 = vmatpush1.xpose.msra.mxu0 %v925
        %929 = vmatprep.subr.mxu0 0.0
        %930 = vmatpush1.xpose.msra.mxu0 0.0
        %931 = vmatprep.subr.mxu0 0.0
        %932 = vmatpush1.xpose.msra.mxu0 0.0
        %933 = vmatprep.subr.mxu0 0.0
        %934 = vmatpush1.xpose.msra.mxu0 0.0
        %935 = vmatprep.subr.mxu0 0.0
        %936 = vmatpush1.xpose.msra.mxu0 0.0
        %937 = vmatprep.subr.mxu0 0.0
        %938 = vmatpush1.xpose.msra.mxu0 0.0
        %939 = vmatprep.subr.mxu0 0.0
        %940 = vmatpush1.xpose.msra.mxu0 0.0
        %941 = vmatprep.subr.mxu0 0.0
        %942 = vmatpush1.xpose.msra.mxu0 0.0
        %943 = vmatprep.subr.mxu0 0.0
        %944 = vmatpush1.xpose.msra.mxu0 0.0
        %945 = vmatprep.subr.mxu0 0.0
        %946 = vmatpush1.xpose.msra.mxu0 0.0
        %947 = vmatprep.subr.mxu0 0.0
        %948 = vmatpush1.xpose.msra.mxu0 0.0
        %949 = vmatprep.subr.mxu0 0.0
        %950 = vmatpush1.xpose.msra.mxu0 0.0
        %951 = vmatprep.subr.mxu0 0.0
        %952 = vmatpush1.xpose.msra.mxu0 0.0
        %953 = vmatprep.subr.mxu0 0.0
        %954 = vmatpush1.xpose.msra.mxu0 0.0
        %955 = vmatprep.subr.mxu0 0.0
        %956 = vmatpush1.xpose.msra.mxu0 0.0
        %957 = vmatprep.subr.mxu0 0.0
        %958 = vmatpush1.xpose.msra.mxu0 0.0
        %959 = vmatprep.subr.mxu0 0.0
        %960 = vmatpush1.xpose.msra.mxu0 0.0
        %961 = vmatprep.subr.mxu0 0.0
        %962 = vmatpush1.xpose.msra.mxu0 0.0
        %963 = vmatprep.subr.mxu0 0.0
        %964 = vmatpush1.xpose.msra.mxu0 0.0
        %965 = vmatprep.subr.mxu0 0.0
        %966 = vmatpush1.xpose.msra.mxu0 0.0
        %967 = vmatprep.subr.mxu0 0.0
        %968 = vmatpush1.xpose.msra.mxu0 0.0
        %969 = vmatprep.subr.mxu0 0.0
        %970 = vmatpush1.xpose.msra.mxu0 0.0
        %971 = vmatprep.subr.mxu0 0.0
        %972 = vmatpush1.xpose.msra.mxu0 0.0
        %973 = vmatprep.subr.mxu0 0.0
        %974 = vmatpush1.xpose.msra.mxu0 0.0
        %975 = vmatprep.subr.mxu0 0.0
        %976 = vmatpush1.xpose.msra.mxu0 0.0
        %977 = vmatprep.subr.mxu0 0.0
        %978 = vmatpush1.xpose.msra.mxu0 0.0
        %979 = vmatprep.subr.mxu0 0.0
        %980 = vmatpush1.xpose.msra.mxu0 0.0
        %981 = vmatprep.subr.mxu0 0.0
        %982 = vmatpush1.xpose.msra.mxu0 0.0
        %983 = vmatprep.subr.mxu0 0.0
        %984 = vmatpush1.xpose.msra.mxu0 0.0
        %985 = vmatprep.subr.mxu0 0.0
        %986 = vmatpush1.xpose.msra.mxu0 0.0
        %987 = vmatprep.subr.mxu0 0.0
        %988 = vmatpush1.xpose.msra.mxu0 0.0
        %989 = vmatprep.subr.mxu0 0.0
        %990 = vmatpush1.xpose.msra.mxu0 0.0
        %991 = vmatprep.mubr.f32.mxu0 0.0
        %992 = vmatmul.mubr.f32.gmra.mrb[0].mxu0 %v923
        %v993 = vpop.f32.mrb[0].mxu0
        %v994 = vadd.f32 %v735, %v993
        %v995 = vpop.f32.mrb[0].mxu0
        %996 = vdwg.mxu0
        %997 = vrot.lane.b32.xlu0 %v607, 96
        %v998 = vpop.permute.xlu0 %997
        %v999 = vsel %vm770, %v600, 0
        %v1001 = vsel %vm770, %v998, 0
        %1003 = vmatprep.subr.mxu0 0.0
        %1004 = vmatpush1.xpose.msra.mxu0 %v1001
        %1005 = vmatprep.subr.mxu0 0.0
        %1006 = vmatpush1.xpose.msra.mxu0 0.0
        %1007 = vmatprep.subr.mxu0 0.0
        %1008 = vmatpush1.xpose.msra.mxu0 0.0
        %1009 = vmatprep.subr.mxu0 0.0
        %1010 = vmatpush1.xpose.msra.mxu0 0.0
        %1011 = vmatprep.subr.mxu0 0.0
        %1012 = vmatpush1.xpose.msra.mxu0 0.0
        %1013 = vmatprep.subr.mxu0 0.0
        %1014 = vmatpush1.xpose.msra.mxu0 0.0
        %1015 = vmatprep.subr.mxu0 0.0
        %1016 = vmatpush1.xpose.msra.mxu0 0.0
        %1017 = vmatprep.subr.mxu0 0.0
        %1018 = vmatpush1.xpose.msra.mxu0 0.0
        %1019 = vmatprep.subr.mxu0 0.0
        %1020 = vmatpush1.xpose.msra.mxu0 0.0
        %1021 = vmatprep.subr.mxu0 0.0
        %1022 = vmatpush1.xpose.msra.mxu0 0.0
        %1023 = vmatprep.subr.mxu0 0.0
        %1024 = vmatpush1.xpose.msra.mxu0 0.0
        %1025 = vmatprep.subr.mxu0 0.0
        %1026 = vmatpush1.xpose.msra.mxu0 0.0
        %1027 = vmatprep.subr.mxu0 0.0
        %1028 = vmatpush1.xpose.msra.mxu0 0.0
        %1029 = vmatprep.subr.mxu0 0.0
        %1030 = vmatpush1.xpose.msra.mxu0 0.0
        %1031 = vmatprep.subr.mxu0 0.0
        %1032 = vmatpush1.xpose.msra.mxu0 0.0
        %1033 = vmatprep.subr.mxu0 0.0
        %1034 = vmatpush1.xpose.msra.mxu0 0.0
        %1035 = vmatprep.subr.mxu0 0.0
        %1036 = vmatpush1.xpose.msra.mxu0 0.0
        %1037 = vmatprep.subr.mxu0 0.0
        %1038 = vmatpush1.xpose.msra.mxu0 0.0
        %1039 = vmatprep.subr.mxu0 0.0
        %1040 = vmatpush1.xpose.msra.mxu0 0.0
        %1041 = vmatprep.subr.mxu0 0.0
        %1042 = vmatpush1.xpose.msra.mxu0 0.0
        %1043 = vmatprep.subr.mxu0 0.0
        %1044 = vmatpush1.xpose.msra.mxu0 0.0
        %1045 = vmatprep.subr.mxu0 0.0
        %1046 = vmatpush1.xpose.msra.mxu0 0.0
        %1047 = vmatprep.subr.mxu0 0.0
        %1048 = vmatpush1.xpose.msra.mxu0 0.0
        %1049 = vmatprep.subr.mxu0 0.0
        %1050 = vmatpush1.xpose.msra.mxu0 0.0
        %1051 = vmatprep.subr.mxu0 0.0
        %1052 = vmatpush1.xpose.msra.mxu0 0.0
        %1053 = vmatprep.subr.mxu0 0.0
        %1054 = vmatpush1.xpose.msra.mxu0 0.0
        %1055 = vmatprep.subr.mxu0 0.0
        %1056 = vmatpush1.xpose.msra.mxu0 0.0
        %1057 = vmatprep.subr.mxu0 0.0
        %1058 = vmatpush1.xpose.msra.mxu0 0.0
        %1059 = vmatprep.subr.mxu0 0.0
        %1060 = vmatpush1.xpose.msra.mxu0 0.0
        %1061 = vmatprep.subr.mxu0 0.0
        %1062 = vmatpush1.xpose.msra.mxu0 0.0
        %1063 = vmatprep.subr.mxu0 0.0
        %1064 = vmatpush1.xpose.msra.mxu0 0.0
        %1065 = vmatprep.subr.mxu0 0.0
        %1066 = vmatpush1.xpose.msra.mxu0 0.0
        %1067 = vmatprep.mubr.f32.mxu0 0.0
        %1068 = vmatmul.mubr.f32.gmra.mrb[0].mxu0 %v999
        %v1069 = vpop.f32.mrb[0].mxu0
        %v1070 = vadd.f32 %v767, %v1069
        %v1071 = vpop.f32.mrb[0].mxu0
        %1072 = vdwg.mxu0
        %v1073 = vsel %vm631, 1, 0
        %vm1074 = vcmp.eq.s32.totalorder %v1073, 1
        %v1075 = vsel %vm1074, %v842, -1e+30
        %v1076 = vsel %vm1074, %v918, -1e+30
        %v1077 = vsel %vm1074, %v994, -1e+30
        %v1078 = vsel %vm1074, %v1070, -1e+30
        %v1079 = vsel %vm770, %v1075, -inf
        %1080 = vmax.xlane.f32.xlu0 %v1079
        %v1081 = vpop.xlane.xlu0 %1080
        %v1082 = vsel %vm770, %v1076, -inf
        %1083 = vmax.xlane.f32.xlu0 %v1082
        %v1084 = vpop.xlane.xlu0 %1083
        %v1085 = vsel %vm770, %v1077, -inf
        %1086 = vmax.xlane.f32.xlu0 %v1085
        %v1087 = vpop.xlane.xlu0 %1086
        %v1088 = vsel %vm770, %v1078, -inf
        %1089 = vmax.xlane.f32.xlu0 %v1088
        %v1090 = vpop.xlane.xlu0 %1089
        %v1091 = vsub.f32 %v1075, %v1081
        %v1092 = vsub.f32 %v1076, %v1084
        %v1093 = vsub.f32 %v1077, %v1087
        %v1094 = vsub.f32 %v1078, %v1090
        %v1095 = vmul.f32 %v1091, 1.442695
        %v1096 = vpow.pop %v1095
        %v1097 = vmul.f32 %v1092, 1.442695
        %v1098 = vpow.pop %v1097
        %v1099 = vmul.f32 %v1093, 1.442695
        %v1100 = vpow.pop %v1099
        %v1101 = vmul.f32 %v1094, 1.442695
        %v1102 = vpow.pop %v1101
        %v1103 = vsel %vm770, %v1096, 0.0
        %1104 = vadd.xlane.f32.xlu0 %v1103
        %v1105 = vpop.xlane.xlu0 %1104
        %v1106 = vsel %vm770, %v1098, 0.0
        %1107 = vadd.xlane.f32.xlu0 %v1106
        %v1108 = vpop.xlane.xlu0 %1107
        %v1109 = vsel %vm770, %v1100, 0.0
        %1110 = vadd.xlane.f32.xlu0 %v1109
        %v1111 = vpop.xlane.xlu0 %1110
        %v1112 = vsel %vm770, %v1102, 0.0
        %1113 = vadd.xlane.f32.xlu0 %v1112
        %v1114 = vpop.xlane.xlu0 %1113
        %v1115 = vrcp.pop %v1105
        %v1116 = vrcp.pop %v1108
        %v1117 = vrcp.pop %v1111
        %v1118 = vrcp.pop %v1114
        %v1119 = vmul.f32 %v1096, %v1115
        %v1120 = vmul.f32 %v1098, %v1116
        %v1121 = vmul.f32 %v1100, %v1117
        %v1122 = vmul.f32 %v1102, %v1118
        %1123 = vrot.lane.b32.xlu0 %v590, 64
        %v1124 = vpop.permute.xlu0 %1123
        %v1127 = vsel %vm770, %v1119, 0
        %1129 = vmatprep.subr.mxu0 0.0
        %1130 = vmatpush1.msra.mxu0 %v1124
        %1131 = vmatprep.subr.mxu0 0.0
        %1132 = vmatpush1.msra.mxu0 0.0
        %1133 = vmatprep.subr.mxu0 0.0
        %1134 = vmatpush1.msra.mxu0 0.0
        %1135 = vmatprep.subr.mxu0 0.0
        %1136 = vmatpush1.msra.mxu0 0.0
        %1137 = vmatprep.subr.mxu0 0.0
        %1138 = vmatpush1.msra.mxu0 0.0
        %1139 = vmatprep.subr.mxu0 0.0
        %1140 = vmatpush1.msra.mxu0 0.0
        %1141 = vmatprep.subr.mxu0 0.0
        %1142 = vmatpush1.msra.mxu0 0.0
        %1143 = vmatprep.subr.mxu0 0.0
        %1144 = vmatpush1.msra.mxu0 0.0
        %1145 = vmatprep.subr.mxu0 0.0
        %1146 = vmatpush1.msra.mxu0 0.0
        %1147 = vmatprep.subr.mxu0 0.0
        %1148 = vmatpush1.msra.mxu0 0.0
        %1149 = vmatprep.subr.mxu0 0.0
        %1150 = vmatpush1.msra.mxu0 0.0
        %1151 = vmatprep.subr.mxu0 0.0
        %1152 = vmatpush1.msra.mxu0 0.0
        %1153 = vmatprep.subr.mxu0 0.0
        %1154 = vmatpush1.msra.mxu0 0.0
        %1155 = vmatprep.subr.mxu0 0.0
        %1156 = vmatpush1.msra.mxu0 0.0
        %1157 = vmatprep.subr.mxu0 0.0
        %1158 = vmatpush1.msra.mxu0 0.0
        %1159 = vmatprep.subr.mxu0 0.0
        %1160 = vmatpush1.msra.mxu0 0.0
        %1161 = vmatprep.subr.mxu0 0.0
        %1162 = vmatpush1.msra.mxu0 0.0
        %1163 = vmatprep.subr.mxu0 0.0
        %1164 = vmatpush1.msra.mxu0 0.0
        %1165 = vmatprep.subr.mxu0 0.0
        %1166 = vmatpush1.msra.mxu0 0.0
        %1167 = vmatprep.subr.mxu0 0.0
        %1168 = vmatpush1.msra.mxu0 0.0
        %1169 = vmatprep.subr.mxu0 0.0
        %1170 = vmatpush1.msra.mxu0 0.0
        %1171 = vmatprep.subr.mxu0 0.0
        %1172 = vmatpush1.msra.mxu0 0.0
        %1173 = vmatprep.subr.mxu0 0.0
        %1174 = vmatpush1.msra.mxu0 0.0
        %1175 = vmatprep.subr.mxu0 0.0
        %1176 = vmatpush1.msra.mxu0 0.0
        %1177 = vmatprep.subr.mxu0 0.0
        %1178 = vmatpush1.msra.mxu0 0.0
        %1179 = vmatprep.subr.mxu0 0.0
        %1180 = vmatpush1.msra.mxu0 0.0
        %1181 = vmatprep.subr.mxu0 0.0
        %1182 = vmatpush1.msra.mxu0 0.0
        %1183 = vmatprep.subr.mxu0 0.0
        %1184 = vmatpush1.msra.mxu0 0.0
        %1185 = vmatprep.subr.mxu0 0.0
        %1186 = vmatpush1.msra.mxu0 0.0
        %1187 = vmatprep.subr.mxu0 0.0
        %1188 = vmatpush1.msra.mxu0 0.0
        %1189 = vmatprep.subr.mxu0 0.0
        %1190 = vmatpush1.msra.mxu0 0.0
        %1191 = vmatprep.subr.mxu0 0.0
        %1192 = vmatpush1.msra.mxu0 0.0
        %1193 = vmatprep.mubr.f32.mxu0 0.0
        %1194 = vmatmul.mubr.f32.gmra.mrb[0].mxu0 %v1127
        %v1195 = vpop.f32.mrb[0].mxu0
        %v1196 = vadd.f32 0.0, %v1195
        %v1197 = vpop.f32.mrb[0].mxu0
        %1198 = vdwg.mxu0
        %1199 = vrot.lane.b32.xlu0 %v603, 64
        %v1200 = vpop.permute.xlu0 %1199
        %v1203 = vsel %vm770, %v1120, 0
        %1205 = vmatprep.subr.mxu0 0.0
        %1206 = vmatpush1.msra.mxu0 %v1200
        %1207 = vmatprep.subr.mxu0 0.0
        %1208 = vmatpush1.msra.mxu0 0.0
        %1209 = vmatprep.subr.mxu0 0.0
        %1210 = vmatpush1.msra.mxu0 0.0
        %1211 = vmatprep.subr.mxu0 0.0
        %1212 = vmatpush1.msra.mxu0 0.0
        %1213 = vmatprep.subr.mxu0 0.0
        %1214 = vmatpush1.msra.mxu0 0.0
        %1215 = vmatprep.subr.mxu0 0.0
        %1216 = vmatpush1.msra.mxu0 0.0
        %1217 = vmatprep.subr.mxu0 0.0
        %1218 = vmatpush1.msra.mxu0 0.0
        %1219 = vmatprep.subr.mxu0 0.0
        %1220 = vmatpush1.msra.mxu0 0.0
        %1221 = vmatprep.subr.mxu0 0.0
        %1222 = vmatpush1.msra.mxu0 0.0
        %1223 = vmatprep.subr.mxu0 0.0
        %1224 = vmatpush1.msra.mxu0 0.0
        %1225 = vmatprep.subr.mxu0 0.0
        %1226 = vmatpush1.msra.mxu0 0.0
        %1227 = vmatprep.subr.mxu0 0.0
        %1228 = vmatpush1.msra.mxu0 0.0
        %1229 = vmatprep.subr.mxu0 0.0
        %1230 = vmatpush1.msra.mxu0 0.0
        %1231 = vmatprep.subr.mxu0 0.0
        %1232 = vmatpush1.msra.mxu0 0.0
        %1233 = vmatprep.subr.mxu0 0.0
        %1234 = vmatpush1.msra.mxu0 0.0
        %1235 = vmatprep.subr.mxu0 0.0
        %1236 = vmatpush1.msra.mxu0 0.0
        %1237 = vmatprep.subr.mxu0 0.0
        %1238 = vmatpush1.msra.mxu0 0.0
        %1239 = vmatprep.subr.mxu0 0.0
        %1240 = vmatpush1.msra.mxu0 0.0
        %1241 = vmatprep.subr.mxu0 0.0
        %1242 = vmatpush1.msra.mxu0 0.0
        %1243 = vmatprep.subr.mxu0 0.0
        %1244 = vmatpush1.msra.mxu0 0.0
        %1245 = vmatprep.subr.mxu0 0.0
        %1246 = vmatpush1.msra.mxu0 0.0
        %1247 = vmatprep.subr.mxu0 0.0
        %1248 = vmatpush1.msra.mxu0 0.0
        %1249 = vmatprep.subr.mxu0 0.0
        %1250 = vmatpush1.msra.mxu0 0.0
        %1251 = vmatprep.subr.mxu0 0.0
        %1252 = vmatpush1.msra.mxu0 0.0
        %1253 = vmatprep.subr.mxu0 0.0
        %1254 = vmatpush1.msra.mxu0 0.0
        %1255 = vmatprep.subr.mxu0 0.0
        %1256 = vmatpush1.msra.mxu0 0.0
        %1257 = vmatprep.subr.mxu0 0.0
        %1258 = vmatpush1.msra.mxu0 0.0
        %1259 = vmatprep.subr.mxu0 0.0
        %1260 = vmatpush1.msra.mxu0 0.0
        %1261 = vmatprep.subr.mxu0 0.0
        %1262 = vmatpush1.msra.mxu0 0.0
        %1263 = vmatprep.subr.mxu0 0.0
        %1264 = vmatpush1.msra.mxu0 0.0
        %1265 = vmatprep.subr.mxu0 0.0
        %1266 = vmatpush1.msra.mxu0 0.0
        %1267 = vmatprep.subr.mxu0 0.0
        %1268 = vmatpush1.msra.mxu0 0.0
        %1269 = vmatprep.mubr.f32.mxu0 0.0
        %1270 = vmatmul.mubr.f32.gmra.mrb[0].mxu0 %v1203
        %v1271 = vpop.f32.mrb[0].mxu0
        %v1272 = vadd.f32 0.0, %v1271
        %v1273 = vpop.f32.mrb[0].mxu0
        %1274 = vdwg.mxu0
        %1275 = vrot.lane.b32.xlu0 %v605, 64
        %v1276 = vpop.permute.xlu0 %1275
        %v1279 = vsel %vm770, %v1121, 0
        %1281 = vmatprep.subr.mxu0 0.0
        %1282 = vmatpush1.msra.mxu0 %v1276
        %1283 = vmatprep.subr.mxu0 0.0
        %1284 = vmatpush1.msra.mxu0 0.0
        %1285 = vmatprep.subr.mxu0 0.0
        %1286 = vmatpush1.msra.mxu0 0.0
        %1287 = vmatprep.subr.mxu0 0.0
        %1288 = vmatpush1.msra.mxu0 0.0
        %1289 = vmatprep.subr.mxu0 0.0
        %1290 = vmatpush1.msra.mxu0 0.0
        %1291 = vmatprep.subr.mxu0 0.0
        %1292 = vmatpush1.msra.mxu0 0.0
        %1293 = vmatprep.subr.mxu0 0.0
        %1294 = vmatpush1.msra.mxu0 0.0
        %1295 = vmatprep.subr.mxu0 0.0
        %1296 = vmatpush1.msra.mxu0 0.0
        %1297 = vmatprep.subr.mxu0 0.0
        %1298 = vmatpush1.msra.mxu0 0.0
        %1299 = vmatprep.subr.mxu0 0.0
        %1300 = vmatpush1.msra.mxu0 0.0
        %1301 = vmatprep.subr.mxu0 0.0
        %1302 = vmatpush1.msra.mxu0 0.0
        %1303 = vmatprep.subr.mxu0 0.0
        %1304 = vmatpush1.msra.mxu0 0.0
        %1305 = vmatprep.subr.mxu0 0.0
        %1306 = vmatpush1.msra.mxu0 0.0
        %1307 = vmatprep.subr.mxu0 0.0
        %1308 = vmatpush1.msra.mxu0 0.0
        %1309 = vmatprep.subr.mxu0 0.0
        %1310 = vmatpush1.msra.mxu0 0.0
        %1311 = vmatprep.subr.mxu0 0.0
        %1312 = vmatpush1.msra.mxu0 0.0
        %1313 = vmatprep.subr.mxu0 0.0
        %1314 = vmatpush1.msra.mxu0 0.0
        %1315 = vmatprep.subr.mxu0 0.0
        %1316 = vmatpush1.msra.mxu0 0.0
        %1317 = vmatprep.subr.mxu0 0.0
        %1318 = vmatpush1.msra.mxu0 0.0
        %1319 = vmatprep.subr.mxu0 0.0
        %1320 = vmatpush1.msra.mxu0 0.0
        %1321 = vmatprep.subr.mxu0 0.0
        %1322 = vmatpush1.msra.mxu0 0.0
        %1323 = vmatprep.subr.mxu0 0.0
        %1324 = vmatpush1.msra.mxu0 0.0
        %1325 = vmatprep.subr.mxu0 0.0
        %1326 = vmatpush1.msra.mxu0 0.0
        %1327 = vmatprep.subr.mxu0 0.0
        %1328 = vmatpush1.msra.mxu0 0.0
        %1329 = vmatprep.subr.mxu0 0.0
        %1330 = vmatpush1.msra.mxu0 0.0
        %1331 = vmatprep.subr.mxu0 0.0
        %1332 = vmatpush1.msra.mxu0 0.0
        %1333 = vmatprep.subr.mxu0 0.0
        %1334 = vmatpush1.msra.mxu0 0.0
        %1335 = vmatprep.subr.mxu0 0.0
        %1336 = vmatpush1.msra.mxu0 0.0
        %1337 = vmatprep.subr.mxu0 0.0
        %1338 = vmatpush1.msra.mxu0 0.0
        %1339 = vmatprep.subr.mxu0 0.0
        %1340 = vmatpush1.msra.mxu0 0.0
        %1341 = vmatprep.subr.mxu0 0.0
        %1342 = vmatpush1.msra.mxu0 0.0
        %1343 = vmatprep.subr.mxu0 0.0
        %1344 = vmatpush1.msra.mxu0 0.0
        %1345 = vmatprep.mubr.f32.mxu0 0.0
        %1346 = vmatmul.mubr.f32.gmra.mrb[0].mxu0 %v1279
        %v1347 = vpop.f32.mrb[0].mxu0
        %v1348 = vadd.f32 0.0, %v1347
        %v1349 = vpop.f32.mrb[0].mxu0
        %1350 = vdwg.mxu0
        %1351 = vrot.lane.b32.xlu0 %v607, 64
        %v1352 = vpop.permute.xlu0 %1351
        %v1355 = vsel %vm770, %v1122, 0
        %1357 = vmatprep.subr.mxu0 0.0
        %1358 = vmatpush1.msra.mxu0 %v1352
        %1359 = vmatprep.subr.mxu0 0.0
        %1360 = vmatpush1.msra.mxu0 0.0
        %1361 = vmatprep.subr.mxu0 0.0
        %1362 = vmatpush1.msra.mxu0 0.0
        %1363 = vmatprep.subr.mxu0 0.0
        %1364 = vmatpush1.msra.mxu0 0.0
        %1365 = vmatprep.subr.mxu0 0.0
        %1366 = vmatpush1.msra.mxu0 0.0
        %1367 = vmatprep.subr.mxu0 0.0
        %1368 = vmatpush1.msra.mxu0 0.0
        %1369 = vmatprep.subr.mxu0 0.0
        %1370 = vmatpush1.msra.mxu0 0.0
        %1371 = vmatprep.subr.mxu0 0.0
        %1372 = vmatpush1.msra.mxu0 0.0
        %1373 = vmatprep.subr.mxu0 0.0
        %1374 = vmatpush1.msra.mxu0 0.0
        %1375 = vmatprep.subr.mxu0 0.0
        %1376 = vmatpush1.msra.mxu0 0.0
        %1377 = vmatprep.subr.mxu0 0.0
        %1378 = vmatpush1.msra.mxu0 0.0
        %1379 = vmatprep.subr.mxu0 0.0
        %1380 = vmatpush1.msra.mxu0 0.0
        %1381 = vmatprep.subr.mxu0 0.0
        %1382 = vmatpush1.msra.mxu0 0.0
        %1383 = vmatprep.subr.mxu0 0.0
        %1384 = vmatpush1.msra.mxu0 0.0
        %1385 = vmatprep.subr.mxu0 0.0
        %1386 = vmatpush1.msra.mxu0 0.0
        %1387 = vmatprep.subr.mxu0 0.0
        %1388 = vmatpush1.msra.mxu0 0.0
        %1389 = vmatprep.subr.mxu0 0.0
        %1390 = vmatpush1.msra.mxu0 0.0
        %1391 = vmatprep.subr.mxu0 0.0
        %1392 = vmatpush1.msra.mxu0 0.0
        %1393 = vmatprep.subr.mxu0 0.0
        %1394 = vmatpush1.msra.mxu0 0.0
        %1395 = vmatprep.subr.mxu0 0.0
        %1396 = vmatpush1.msra.mxu0 0.0
        %1397 = vmatprep.subr.mxu0 0.0
        %1398 = vmatpush1.msra.mxu0 0.0
        %1399 = vmatprep.subr.mxu0 0.0
        %1400 = vmatpush1.msra.mxu0 0.0
        %1401 = vmatprep.subr.mxu0 0.0
        %1402 = vmatpush1.msra.mxu0 0.0
        %1403 = vmatprep.subr.mxu0 0.0
        %1404 = vmatpush1.msra.mxu0 0.0
        %1405 = vmatprep.subr.mxu0 0.0
        %1406 = vmatpush1.msra.mxu0 0.0
        %1407 = vmatprep.subr.mxu0 0.0
        %1408 = vmatpush1.msra.mxu0 0.0
        %1409 = vmatprep.subr.mxu0 0.0
        %1410 = vmatpush1.msra.mxu0 0.0
        %1411 = vmatprep.subr.mxu0 0.0
        %1412 = vmatpush1.msra.mxu0 0.0
        %1413 = vmatprep.subr.mxu0 0.0
        %1414 = vmatpush1.msra.mxu0 0.0
        %1415 = vmatprep.subr.mxu0 0.0
        %1416 = vmatpush1.msra.mxu0 0.0
        %1417 = vmatprep.subr.mxu0 0.0
        %1418 = vmatpush1.msra.mxu0 0.0
        %1419 = vmatprep.subr.mxu0 0.0
        %1420 = vmatpush1.msra.mxu0 0.0
        %1421 = vmatprep.mubr.f32.mxu0 0.0
        %1422 = vmatmul.mubr.f32.gmra.mrb[0].mxu0 %v1355
        %v1423 = vpop.f32.mrb[0].mxu0
        %v1424 = vadd.f32 0.0, %v1423
        %v1425 = vpop.f32.mrb[0].mxu0
        %1426 = vdwg.mxu0
        %1428 = vrot.lane.b32.xlu0 %v1272, 8
        %v1429 = vpop.permute.xlu0 %1428
        %1432 = vrot.lane.b32.xlu0 %v1348, 16
        %v1433 = vpop.permute.xlu0 %1432
        %1436 = vrot.lane.b32.xlu0 %v1424, 24
        %v1437 = vpop.permute.xlu0 %1436
        %v1439 = vsel %vm770, %v1196, %v1429
        %vm1440 = vcmask 130048
        %v1441 = vsel %vm1440, %v1439, %v1433
        %vm1442 = vcmask 195584
        %v1443 = vsel %vm1442, %v1441, %v1437
        %v1444 = vld [vmem:[%s6] sm:$0xff]
        %v1445 = vld [vmem:[%s6 + $0x8] sm:$0xff]
        %v1446 = vld [vmem:[%s6 + $0x10] sm:$0xff]
        %v1447 = vld [vmem:[%s6 + $0x18] sm:$0xff]
        %v1448 = vld [vmem:[%s7] sm:$0x1]
        %v1450 = vlaneseq
        %v1451 = vshrl.u32 %v1450, 7
        %v1452 = vsub.s32 0, %v1451
        %v1453 = vrot.slane %v1448, %v1452
        %v1456 = vsel %vm480, %v1443, 0
        %1458 = vmatprep.subr.mxu0 0.0
        %1459 = vmatpush1.msra.mxu0 %v1444
        %1460 = vmatprep.subr.mxu0 0.0
        %1461 = vmatpush1.msra.mxu0 %v1445
        %1462 = vmatprep.subr.mxu0 0.0
        %1463 = vmatpush1.msra.mxu0 %v1446
        %1464 = vmatprep.subr.mxu0 0.0
        %1465 = vmatpush1.msra.mxu0 %v1447
        %1466 = vmatprep.subr.mxu0 0.0
        %1467 = vmatpush1.msra.mxu0 0.0
        %1468 = vmatprep.subr.mxu0 0.0
        %1469 = vmatpush1.msra.mxu0 0.0
        %1470 = vmatprep.subr.mxu0 0.0
        %1471 = vmatpush1.msra.mxu0 0.0
        %1472 = vmatprep.subr.mxu0 0.0
        %1473 = vmatpush1.msra.mxu0 0.0
        %1474 = vmatprep.subr.mxu0 0.0
        %1475 = vmatpush1.msra.mxu0 0.0
        %1476 = vmatprep.subr.mxu0 0.0
        %1477 = vmatpush1.msra.mxu0 0.0
        %1478 = vmatprep.subr.mxu0 0.0
        %1479 = vmatpush1.msra.mxu0 0.0
        %1480 = vmatprep.subr.mxu0 0.0
        %1481 = vmatpush1.msra.mxu0 0.0
        %1482 = vmatprep.subr.mxu0 0.0
        %1483 = vmatpush1.msra.mxu0 0.0
        %1484 = vmatprep.subr.mxu0 0.0
        %1485 = vmatpush1.msra.mxu0 0.0
        %1486 = vmatprep.subr.mxu0 0.0
        %1487 = vmatpush1.msra.mxu0 0.0
        %1488 = vmatprep.subr.mxu0 0.0
        %1489 = vmatpush1.msra.mxu0 0.0
        %1490 = vmatprep.subr.mxu0 0.0
        %1491 = vmatpush1.msra.mxu0 0.0
        %1492 = vmatprep.subr.mxu0 0.0
        %1493 = vmatpush1.msra.mxu0 0.0
        %1494 = vmatprep.subr.mxu0 0.0
        %1495 = vmatpush1.msra.mxu0 0.0
        %1496 = vmatprep.subr.mxu0 0.0
        %1497 = vmatpush1.msra.mxu0 0.0
        %1498 = vmatprep.subr.mxu0 0.0
        %1499 = vmatpush1.msra.mxu0 0.0
        %1500 = vmatprep.subr.mxu0 0.0
        %1501 = vmatpush1.msra.mxu0 0.0
        %1502 = vmatprep.subr.mxu0 0.0
        %1503 = vmatpush1.msra.mxu0 0.0
        %1504 = vmatprep.subr.mxu0 0.0
        %1505 = vmatpush1.msra.mxu0 0.0
        %1506 = vmatprep.subr.mxu0 0.0
        %1507 = vmatpush1.msra.mxu0 0.0
        %1508 = vmatprep.subr.mxu0 0.0
        %1509 = vmatpush1.msra.mxu0 0.0
        %1510 = vmatprep.subr.mxu0 0.0
        %1511 = vmatpush1.msra.mxu0 0.0
        %1512 = vmatprep.subr.mxu0 0.0
        %1513 = vmatpush1.msra.mxu0 0.0
        %1514 = vmatprep.subr.mxu0 0.0
        %1515 = vmatpush1.msra.mxu0 0.0
        %1516 = vmatprep.subr.mxu0 0.0
        %1517 = vmatpush1.msra.mxu0 0.0
        %1518 = vmatprep.subr.mxu0 0.0
        %1519 = vmatpush1.msra.mxu0 0.0
        %1520 = vmatprep.subr.mxu0 0.0
        %1521 = vmatpush1.msra.mxu0 0.0
        %1522 = vmatprep.mubr.f32.mxu0 0.0
        %1523 = vmatmul.mubr.f32.gmra.mrb[0].mxu0 %v1456
        %v1524 = vpop.f32.mrb[0].mxu0
        %v1525 = vadd.f32 %v1453, %v1524
        %v1526 = vpop.f32.mrb[0].mxu0
        %1527 = vdwg.mxu0
        %v1528 = vadd.f32 %v477, %v1525
        %v1529 = vld [vmem:[%s8] sm:$0x1]
        %v1530 = vld [vmem:[%s9] sm:$0x1]
        %v1531 = vsel %vm480, %v1528, 0.0
        %1532 = vadd.xlane.f32.xlu0 %v1531
        %v1533 = vpop.xlane.xlu0 %1532
        %v1534 = vmul.f32 %v1533, %v484
        %v1535 = vsub.f32 %v1528, %v1534
        %v1536 = vmul.f32 %v1535, %v1535
        %v1537 = vsel %vm480, %v1536, 0.0
        %1538 = vadd.xlane.f32.xlu0 %v1537
        %v1539 = vpop.xlane.xlu0 %1538
        %v1540 = vmul.f32 %v1539, %v484
        %v1541 = vadd.f32 %v1540, 1e-05
        %v1542 = vrsqrt.pop %v1541
        %v1543 = vmul.f32 %v1535, %v1542
        %v1545 = vlaneseq
        %v1546 = vshrl.u32 %v1545, 7
        %v1547 = vsub.s32 0, %v1546
        %v1548 = vrot.slane %v1529, %v1547
        %v1550 = vmul.f32 %v1543, %v1548
        %v1552 = vlaneseq
        %v1553 = vshrl.u32 %v1552, 7
        %v1554 = vsub.s32 0, %v1553
        %v1555 = vrot.slane %v1530, %v1554
        %v1557 = vadd.f32 %v1550, %v1555
        %v1558 = vld [vmem:[%s10] sm:$0xff]
        %v1559 = vld [vmem:[%s10 + $0x8] sm:$0xff]
        %v1560 = vld [vmem:[%s10 + $0x10] sm:$0xff]
        %v1561 = vld [vmem:[%s10 + $0x18] sm:$0xff]
        %v1562 = vld [vmem:[%s11] sm:$0x1]
        %v1564 = vlaneseq
        %v1565 = vshrl.u32 %v1564, 7
        %v1566 = vsub.s32 0, %v1565
        %v1567 = vrot.slane %v1562, %v1566
        %v1570 = vsel %vm480, %v1557, 0
        %1572 = vmatprep.subr.mxu0 0.0
        %1573 = vmatpush1.msra.mxu0 %v1558
        %1574 = vmatprep.subr.mxu0 0.0
        %1575 = vmatpush1.msra.mxu0 %v1559
        %1576 = vmatprep.subr.mxu0 0.0
        %1577 = vmatpush1.msra.mxu0 %v1560
        %1578 = vmatprep.subr.mxu0 0.0
        %1579 = vmatpush1.msra.mxu0 %v1561
        %1580 = vmatprep.subr.mxu0 0.0
        %1581 = vmatpush1.msra.mxu0 0.0
        %1582 = vmatprep.subr.mxu0 0.0
        %1583 = vmatpush1.msra.mxu0 0.0
        %1584 = vmatprep.subr.mxu0 0.0
        %1585 = vmatpush1.msra.mxu0 0.0
        %1586 = vmatprep.subr.mxu0 0.0
        %1587 = vmatpush1.msra.mxu0 0.0
        %1588 = vmatprep.subr.mxu0 0.0
        %1589 = vmatpush1.msra.mxu0 0.0
        %1590 = vmatprep.subr.mxu0 0.0
        %1591 = vmatpush1.msra.mxu0 0.0
        %1592 = vmatprep.subr.mxu0 0.0
        %1593 = vmatpush1.msra.mxu0 0.0
        %1594 = vmatprep.subr.mxu0 0.0
        %1595 = vmatpush1.msra.mxu0 0.0
        %1596 = vmatprep.subr.mxu0 0.0
        %1597 = vmatpush1.msra.mxu0 0.0
        %1598 = vmatprep.subr.mxu0 0.0
        %1599 = vmatpush1.msra.mxu0 0.0
        %1600 = vmatprep.subr.mxu0 0.0
        %1601 = vmatpush1.msra.mxu0 0.0
        %1602 = vmatprep.subr.mxu0 0.0
        %1603 = vmatpush1.msra.mxu0 0.0
        %1604 = vmatprep.subr.mxu0 0.0
        %1605 = vmatpush1.msra.mxu0 0.0
        %1606 = vmatprep.subr.mxu0 0.0
        %1607 = vmatpush1.msra.mxu0 0.0
        %1608 = vmatprep.subr.mxu0 0.0
        %1609 = vmatpush1.msra.mxu0 0.0
        %1610 = vmatprep.subr.mxu0 0.0
        %1611 = vmatpush1.msra.mxu0 0.0
        %1612 = vmatprep.subr.mxu0 0.0
        %1613 = vmatpush1.msra.mxu0 0.0
        %1614 = vmatprep.subr.mxu0 0.0
        %1615 = vmatpush1.msra.mxu0 0.0
        %1616 = vmatprep.subr.mxu0 0.0
        %1617 = vmatpush1.msra.mxu0 0.0
        %1618 = vmatprep.subr.mxu0 0.0
        %1619 = vmatpush1.msra.mxu0 0.0
        %1620 = vmatprep.subr.mxu0 0.0
        %1621 = vmatpush1.msra.mxu0 0.0
        %1622 = vmatprep.subr.mxu0 0.0
        %1623 = vmatpush1.msra.mxu0 0.0
        %1624 = vmatprep.subr.mxu0 0.0
        %1625 = vmatpush1.msra.mxu0 0.0
        %1626 = vmatprep.subr.mxu0 0.0
        %1627 = vmatpush1.msra.mxu0 0.0
        %1628 = vmatprep.subr.mxu0 0.0
        %1629 = vmatpush1.msra.mxu0 0.0
        %1630 = vmatprep.subr.mxu0 0.0
        %1631 = vmatpush1.msra.mxu0 0.0
        %1632 = vmatprep.subr.mxu0 0.0
        %1633 = vmatpush1.msra.mxu0 0.0
        %1634 = vmatprep.subr.mxu0 0.0
        %1635 = vmatpush1.msra.mxu0 0.0
        %1636 = vmatprep.mubr.f32.mxu0 0.0
        %1637 = vmatmul.mubr.f32.gmra.mrb[0].mxu0 %v1570
        %v1638 = vpop.f32.mrb[0].mxu0
        %v1639 = vadd.f32 %v1567, %v1638
        %v1640 = vpop.f32.mrb[0].mxu0
        %1641 = vdwg.mxu0
        %v1642 = vmul.f32 %v1639, 0.5
        %v1643 = vmul.f32 %v1639, 0.044715
        %v1644 = vmul.f32 %v1643, %v1639
        %v1645 = vmul.f32 %v1644, %v1639
        %v1646 = vadd.f32 %v1639, %v1645
        %v1647 = vmul.f32 %v1646, 0.7978846
        %v1648 = vtanh.pop %v1647
        %v1649 = vadd.f32 %v1648, 1.0
        %v1650 = vmul.f32 %v1642, %v1649
        %v1651 = vld [vmem:[%s12] sm:$0xff]
        %v1652 = vld [vmem:[%s12 + $0x8] sm:$0xff]
        %v1653 = vld [vmem:[%s12 + $0x10] sm:$0xff]
        %v1654 = vld [vmem:[%s12 + $0x18] sm:$0xff]
        %v1655 = vld [vmem:[%s12 + $0x20] sm:$0xff]
        %v1656 = vld [vmem:[%s12 + $0x28] sm:$0xff]
        %v1657 = vld [vmem:[%s12 + $0x30] sm:$0xff]
        %v1658 = vld [vmem:[%s12 + $0x38] sm:$0xff]
        %v1659 = vld [vmem:[%s12 + $0x40] sm:$0xff]
        %v1660 = vld [vmem:[%s12 + $0x48] sm:$0xff]
        %v1661 = vld [vmem:[%s12 + $0x50] sm:$0xff]
        %v1662 = vld [vmem:[%s12 + $0x58] sm:$0xff]
        %v1663 = vld [vmem:[%s12 + $0x60] sm:$0xff]
        %v1664 = vld [vmem:[%s12 + $0x68] sm:$0xff]
        %v1665 = vld [vmem:[%s12 + $0x70] sm:$0xff]
        %v1666 = vld [vmem:[%s12 + $0x78] sm:$0xff]
        %v1667 = vld [vmem:[%s13] sm:$0x1]
        %v1669 = vlaneseq
        %v1670 = vshrl.u32 %v1669, 7
        %v1671 = vsub.s32 0, %v1670
        %v1672 = vrot.slane %v1667, %v1671
        %1674 = vmatprep.subr.mxu0 0.0
        %1675 = vmatpush1.msra.mxu0 %v1651
        %1676 = vmatprep.subr.mxu0 0.0
        %1677 = vmatpush1.msra.mxu0 %v1652
        %1678 = vmatprep.subr.mxu0 0.0
        %1679 = vmatpush1.msra.mxu0 %v1653
        %1680 = vmatprep.subr.mxu0 0.0
        %1681 = vmatpush1.msra.mxu0 %v1654
        %1682 = vmatprep.subr.mxu0 0.0
        %1683 = vmatpush1.msra.mxu0 %v1655
        %1684 = vmatprep.subr.mxu0 0.0
        %1685 = vmatpush1.msra.mxu0 %v1656
        %1686 = vmatprep.subr.mxu0 0.0
        %1687 = vmatpush1.msra.mxu0 %v1657
        %1688 = vmatprep.subr.mxu0 0.0
        %1689 = vmatpush1.msra.mxu0 %v1658
        %1690 = vmatprep.subr.mxu0 0.0
        %1691 = vmatpush1.msra.mxu0 %v1659
        %1692 = vmatprep.subr.mxu0 0.0
        %1693 = vmatpush1.msra.mxu0 %v1660
        %1694 = vmatprep.subr.mxu0 0.0
        %1695 = vmatpush1.msra.mxu0 %v1661
        %1696 = vmatprep.subr.mxu0 0.0
        %1697 = vmatpush1.msra.mxu0 %v1662
        %1698 = vmatprep.subr.mxu0 0.0
        %1699 = vmatpush1.msra.mxu0 %v1663
        %1700 = vmatprep.subr.mxu0 0.0
        %1701 = vmatpush1.msra.mxu0 %v1664
        %1702 = vmatprep.subr.mxu0 0.0
        %1703 = vmatpush1.msra.mxu0 %v1665
        %1704 = vmatprep.subr.mxu0 0.0
        %1705 = vmatpush1.msra.mxu0 %v1666
        %1706 = vmatprep.subr.mxu0 0.0
        %1707 = vmatpush1.msra.mxu0 0.0
        %1708 = vmatprep.subr.mxu0 0.0
        %1709 = vmatpush1.msra.mxu0 0.0
        %1710 = vmatprep.subr.mxu0 0.0
        %1711 = vmatpush1.msra.mxu0 0.0
        %1712 = vmatprep.subr.mxu0 0.0
        %1713 = vmatpush1.msra.mxu0 0.0
        %1714 = vmatprep.subr.mxu0 0.0
        %1715 = vmatpush1.msra.mxu0 0.0
        %1716 = vmatprep.subr.mxu0 0.0
        %1717 = vmatpush1.msra.mxu0 0.0
        %1718 = vmatprep.subr.mxu0 0.0
        %1719 = vmatpush1.msra.mxu0 0.0
        %1720 = vmatprep.subr.mxu0 0.0
        %1721 = vmatpush1.msra.mxu0 0.0
        %1722 = vmatprep.subr.mxu0 0.0
        %1723 = vmatpush1.msra.mxu0 0.0
        %1724 = vmatprep.subr.mxu0 0.0
        %1725 = vmatpush1.msra.mxu0 0.0
        %1726 = vmatprep.subr.mxu0 0.0
        %1727 = vmatpush1.msra.mxu0 0.0
        %1728 = vmatprep.subr.mxu0 0.0
        %1729 = vmatpush1.msra.mxu0 0.0
        %1730 = vmatprep.subr.mxu0 0.0
        %1731 = vmatpush1.msra.mxu0 0.0
        %1732 = vmatprep.subr.mxu0 0.0
        %1733 = vmatpush1.msra.mxu0 0.0
        %1734 = vmatprep.subr.mxu0 0.0
        %1735 = vmatpush1.msra.mxu0 0.0
        %1736 = vmatprep.subr.mxu0 0.0
        %1737 = vmatpush1.msra.mxu0 0.0
        %1738 = vmatprep.mubr.f32.mxu0 0.0
        %1739 = vmatmul.mubr.f32.gmra.mrb[0].mxu0 %v1650
        %v1740 = vpop.f32.mrb[0].mxu0
        %v1741 = vadd.f32 %v1672, %v1740
        %v1742 = vpop.f32.mrb[0].mxu0
        %1743 = vdwg.mxu0
        %v1744 = vadd.f32 %v1528, %v1741
        %1745 = vst.msk [vmem:[%s472] sm:$0xff] %vm480, %v1744
        %s1746 = sand.u32 %s336, 1
        %s1747 = scalar_lea.sflag [#allocation3], %s1746
        %s1748 = sand.u32 %s336, 1
        %s1749 = smul.addr %s1748, 8
        %s1750 = scalar_lea.vmem [#allocation5], %s1749
        // Predicated region
        $region81: #{tpu_custom_call.1} parent=75 // pred_check
          %p1751 = pneg %p346
        $region82: #{tpu_custom_call.1} parent=75 // pred_check_branch
          %1753 = sbr.rel (%p1751) target = $region84
        $region83: #{tpu_custom_call.1} parent=75 // pred_region
          %s1755 = ssub.s32 128, 128
          %1756 = vsyncadd %s1747, %s1755
          %s1757 = smul.addr %s29, 128
          %s1758 = scalar_lea.hbm %s14, %s1757
          %s1760 = sshll.u32 %s1750, 4
          %s1761 = int_to_ptr.vmem [resolvable:$true] %s1760
          %1763 = dma.vmem_to_hbm [thread:$0]  %s1761, 128, %s1758, %s1747
        $region84: #{tpu_custom_call.1} parent=75 // pred_fallthru
          _
      $region76: #{tpu_custom_call.1} parent=5 // pred_fallthru
        _
      %p1764 = scmp.le.s32.totalorder 2, %s24
      // Predicated region
      $region85: #{tpu_custom_call.1} parent=5 // pred_check
        %p1765 = pneg %p1764
      $region86: #{tpu_custom_call.1} parent=5 // pred_check_branch
        %1767 = sbr.rel (%p1765) target = $region88
      $region87: #{tpu_custom_call.1} parent=5 // pred_region
        %s1768 = ssub.s32 %s24, 2
        // Predicated region
        $region89: #{tpu_custom_call.1} parent=87 // pred_check
          %p1769 = pneg %p352
        $region90: #{tpu_custom_call.1} parent=87 // pred_check_branch
          %1771 = sbr.rel (%p1769) target = $region92
        $region91: #{tpu_custom_call.1} parent=87 // pred_region
          %s1772 = sand.u32 %s337, 1
          %s1773 = scalar_lea.sflag [#allocation3], %s1772
          %s1774 = sand.u32 %s337, 1
          %s1775 = smul.addr %s1774, 8
          %s1776 = scalar_lea.vmem [#allocation5], %s1775
          %1777 = dma.done %s1773, 128
        $region92: #{tpu_custom_call.1} parent=87 // pred_fallthru
          _
      $region88: #{tpu_custom_call.1} parent=5 // pred_fallthru
        _
    $region6: #{tpu_custom_call.1} parent=1 // loop_footer
      %s28 = sadd.s32 1, %s24
    $region7: #{tpu_custom_call.1} parent=1 // loop_footer_branch
      %23 = sbr.rel target = $region3
    $region8: #{tpu_custom_call.1} parent=1 // loop_exit
      _
    %1778 = vsyncpa [#allocation3], 1
    %s1779 = scalar_lea.sflag [#allocation3], 1
    %1780 = vsyncpa %s1779, 1
    %1781 = vsyncpa [#allocation4], 1
    %s1782 = scalar_lea.sflag [#allocation4], 1
    %1783 = vsyncpa %s1782, 1

</llo_original>
